<compile_context>
chip_gen: v7x
topology: tpu7x:2x2x1
jax: 0.10.0
libtpu: 0.0.40
codegen_flags: <defaults>
</compile_context>

<pallas_src>
import functools

import numpy as np
import jax
import jax.numpy as jnp
from jax.experimental import pallas as pl
from jax.experimental.pallas import tpu as pltpu

LANE = 128  # padded feature / hidden width (lane dimension)


# ----------------------------------------------------------------------------
# Pallas kernel: fused (block-diagonal) MADE conditioner + affine transformer.
# ----------------------------------------------------------------------------
def _maf_kernel(x_ref, w_ref, b_ref, y_ref, ls_ref, *, dp, hp):
    x = x_ref[...]                                        # (TB, Dp)

    # Static, lane-aligned slices of the packed weight / bias slabs.
    w1 = w_ref[:, 0:hp]                                   # (Dp, Hp)
    w2 = w_ref[:, hp:2 * hp]                              # (Hp, Hp)
    w3 = w_ref[:, 2 * hp:2 * hp + 2 * dp]                 # (Hp, 2*Dp)
    b1 = b_ref[:, 0:hp]                                   # (1, Hp)
    b2 = b_ref[:, hp:2 * hp]                              # (1, Hp)
    b3 = b_ref[:, 2 * hp:2 * hp + 2 * dp]                 # (1, 2*Dp)

    h1 = jnp.tanh(jnp.dot(x, w1, preferred_element_type=jnp.float32) + b1)
    h2 = jnp.tanh(jnp.dot(h1, w2, preferred_element_type=jnp.float32) + b2)
    out = jnp.dot(h2, w3, preferred_element_type=jnp.float32) + b3   # (TB, 2*Dp)

    shift = out[:, 0:dp]                                  # (TB, Dp)
    log_scale = out[:, dp:2 * dp]                         # (TB, Dp)

    y_ref[...] = x * jnp.exp(log_scale) + shift
    ls_ref[...] = log_scale                               # lane-dense; reduce outside


def maf_forward(x, packed, *, block_batch=512):
    """Run the MAF forward pass. x: (B, D) float32 -> (y (B, D), log_det_J (B,))."""
    B, D = x.shape
    dp, hp = packed["dp"], packed["hp"]
    w_slab, b_slab = packed["w"], packed["b"]

    # Batch tile: multiple of 8 sublanes, capped by the (padded) batch size.
    bb = min(block_batch, max(8, B))
    bb = max(8, (bb // 8) * 8)
    b_pad = (-B) % bb
    Bp = B + b_pad

    # Zero-pad batch to a tile multiple and features to lane width (padded
    # weight rows/cols are zero, so the math is unchanged).
    x_p = jnp.pad(x.astype(jnp.float32), ((0, b_pad), (0, dp - D)))
    grid = (Bp // bb,)

    flops = 2 * Bp * (dp * hp + hp * hp + hp * 2 * dp) + 4 * Bp * dp
    transcendentals = Bp * (2 * hp + dp)
    bytes_accessed = 4 * (x_p.size + 2 * Bp * dp + w_slab.size + b_slab.size)

    kernel = functools.partial(_maf_kernel, dp=dp, hp=hp)

    y_p, ls_p = pl.pallas_call(
        kernel,
        grid=grid,
        in_specs=[
            pl.BlockSpec((bb, dp), lambda i: (i, 0)),           # x tile
            pl.BlockSpec(w_slab.shape, lambda i: (0, 0)),       # packed weights
            pl.BlockSpec(b_slab.shape, lambda i: (0, 0)),       # packed biases
        ],
        out_specs=[
            pl.BlockSpec((bb, dp), lambda i: (i, 0)),           # y tile
            pl.BlockSpec((bb, dp), lambda i: (i, 0)),           # log_scale tile
        ],
        out_shape=[jax.ShapeDtypeStruct((Bp, dp), jnp.float32),
                   jax.ShapeDtypeStruct((Bp, dp), jnp.float32)],
        compiler_params=pltpu.CompilerParams(
            dimension_semantics=("parallel",),
            vmem_limit_bytes=32 * 1024 * 1024),
        cost_estimate=pl.CostEstimate(
            flops=flops,
            transcendentals=transcendentals,
            bytes_accessed=bytes_accessed),
    )(x_p, w_slab, b_slab)

    y = y_p[:B, :D]
    # Padded log_scale lanes are exactly zero; reduce only the real features.
    log_det_J = jnp.sum(ls_p[:B, :D], axis=-1)
    return y, log_det_J


# ----------------------------------------------------------------------------
# Parameter setup (glue): MADE autoregressive masks + masked weight norm,
# then fuse the two conditioners into one block-diagonal padded network.
# ----------------------------------------------------------------------------
def _made_masks(D, H):
    # degrees_in='input', blocks=1, no conditioning features; H = D - 1.
    deg_in = np.arange(D)
    deg_hidden = np.arange(H)
    deg_out = np.arange(D)
    m1 = (deg_hidden[:, None] >= deg_in[None, :]).astype(np.float32)      # (H, D)
    m2 = (deg_hidden[:, None] >= deg_hidden[None, :]).astype(np.float32)  # (H, H)
    m3 = (deg_out[:, None] > deg_hidden[None, :]).astype(np.float32)      # (D, H)
    return m1, m2, m3


def _masked_weight_norm(v, g, mask):
    # Effective weight of a weight-normalized masked linear layer:
    #   W[o, :] = g[o] * (mask[o, :] * v[o, :]) / ||mask[o, :] * v[o, :]||
    mv = v * mask
    norm = np.sqrt((mv ** 2).sum(axis=1, keepdims=True)) + 1e-12
    return g[:, None] * mv / norm


def init_maf_params(key, D, *, dp=LANE, hp=LANE):
    H = D - 1
    assert D <= dp and 2 * H <= hp and dp == hp
    masks = _made_masks(D, H)
    keys = jax.random.split(key, 18)

    # Dense effective (in, out) weights for the two conditioners (shift, log_scale).
    nets = []
    ki = 0
    for _cond in range(2):
        layers = []
        for li, mask in enumerate(masks):
            out_dim, in_dim = mask.shape
            v = np.asarray(jax.random.normal(keys[ki], (out_dim, in_dim),
                                             jnp.float32)) * 0.5
            g = np.asarray(jax.random.normal(keys[ki + 1], (out_dim,),
                                             jnp.float32)) * (0.1 if li == 2 else 1.0)
            b = np.asarray(jax.random.normal(keys[ki + 2], (out_dim,),
                                             jnp.float32)) * 0.1
            ki += 3
            w_eff = _masked_weight_norm(v, g, mask)              # (out, in)
            layers.append((w_eff.T.astype(np.float32), b.astype(np.float32)))
        nets.append(layers)
    (w1s, b1s), (w2s, b2s), (w3s, b3s) = nets[0]
    (w1l, b1l), (w2l, b2l), (w3l, b3l) = nets[1]

    # Fuse into one block-diagonal network and zero-pad to lane width.
    w1p = np.zeros((dp, hp), np.float32)
    w1p[:D, :H] = w1s
    w1p[:D, H:2 * H] = w1l
    b1p = np.zeros((1, hp), np.float32)
    b1p[0, :H] = b1s
    b1p[0, H:2 * H] = b1l

    w2p = np.zeros((hp, hp), np.float32)
    w2p[:H, :H] = w2s
    w2p[H:2 * H, H:2 * H] = w2l
    b2p = np.zeros((1, hp), np.float32)
    b2p[0, :H] = b2s
    b2p[0, H:2 * H] = b2l

    w3p = np.zeros((hp, 2 * dp), np.float32)
    w3p[:H, :D] = w3s                       # shift head  -> lanes [0, D)
    w3p[H:2 * H, dp:dp + D] = w3l           # log_scale   -> lanes [dp, dp + D)
    b3p = np.zeros((1, 2 * dp), np.float32)
    b3p[0, :D] = b3s
    b3p[0, dp:dp + D] = b3l

    # Pack into two pre-padded slabs: (dp, 2*hp + 2*dp) weights, (1, ...) biases.
    w_slab = np.concatenate([w1p, w2p, w3p], axis=1)
    b_slab = np.concatenate([b1p, b2p, b3p], axis=1)

    packed = {"w": jnp.asarray(w_slab), "b": jnp.asarray(b_slab),
              "dp": dp, "hp": hp}

    # Unfused, unpadded weights for the pure-JAX reference.
    raw = {"w1s": jnp.asarray(w1s), "b1s": jnp.asarray(b1s[None, :]),
           "w2s": jnp.asarray(w2s), "b2s": jnp.asarray(b2s[None, :]),
           "w3s": jnp.asarray(w3s), "b3s": jnp.asarray(b3s[None, :]),
           "w1l": jnp.asarray(w1l), "b1l": jnp.asarray(b1l[None, :]),
           "w2l": jnp.asarray(w2l), "b2l": jnp.asarray(b2l[None, :]),
           "w3l": jnp.asarray(w3l), "b3l": jnp.asarray(b3l[None, :])}
    return packed, raw


# ----------------------------------------------------------------------------
# Pure-JAX reference (same math, unfused/unpadded) for a correctness check.
# ----------------------------------------------------------------------------
def maf_reference(x, p):
    def made(w1, b1, w2, b2, w3, b3):
        h1 = jnp.tanh(x @ w1 + b1)
        h2 = jnp.tanh(h1 @ w2 + b2)
        return h2 @ w3 + b3

    shift = made(p["w1s"], p["b1s"], p["w2s"], p["b2s"], p["w3s"], p["b3s"])
    log_scale = made(p["w1l"], p["b1l"], p["w2l"], p["b2l"], p["w3l"], p["b3l"])
    y = x * jnp.exp(log_scale) + shift
    return y, jnp.sum(log_scale, axis=-1)


# TODO(synk): MAF.inverse (sequential block-by-block solve over degrees) is not
# implemented; only the forward pass is mapped to the kernel.

if __name__ == "__main__":
    B, D = 1024, 16                      # dimension_in=16 -> hidden H = D - 1 = 15
    key = jax.random.PRNGKey(0)
    k_x, k_p = jax.random.split(key)

    x = jax.random.normal(k_x, (B, D), dtype=jnp.float32)
    packed, raw = init_maf_params(k_p, D)

    # block_batch=512 -> grid of 2 "parallel" steps (one per v7x TensorCore).
    y, log_det_J = maf_forward(x, packed, block_batch=512)
    y = jax.block_until_ready(y)
    log_det_J = jax.block_until_ready(log_det_J)

    y_ref, ldj_ref = maf_reference(x, raw)
    assert y.shape == (B, D) and log_det_J.shape == (B,)
    np.testing.assert_allclose(np.asarray(y), np.asarray(y_ref),
                               rtol=1e-5, atol=1e-5)
    np.testing.assert_allclose(np.asarray(log_det_J), np.asarray(ldj_ref),
                               rtol=1e-5, atol=1e-5)
    print("KERNEL_OK")
</pallas_src>

<mosaic_0001>
module attributes {stable_mosaic.version = 11 : i64} {
  func.func @_maf_kernel(%arg0: i32, %arg1: memref<512x128xf32, #tpu.memory_space<vmem>>, %arg2: memref<128x512xf32, #tpu.memory_space<vmem>>, %arg3: memref<1x512xf32, #tpu.memory_space<vmem>>, %arg4: memref<512x128xf32, #tpu.memory_space<vmem>>, %arg5: memref<512x128xf32, #tpu.memory_space<vmem>>) attributes {dimension_semantics = [#tpu.dimension_semantics<parallel>], iteration_bounds = array<i64: 2>, scalar_prefetch = 0 : i64, scratch_operands = 0 : i64, tpu.core_type = #tpu.core_type<tc>, window_params = [{transform_indices = @transform_0, window_bounds = array<i64: 512, 128>}, {pipeline_mode = #tpu.pipeline_mode<synchronous>, transform_indices = @transform_1, window_bounds = array<i64: 128, 512>}, {pipeline_mode = #tpu.pipeline_mode<synchronous>, transform_indices = @transform_2, window_bounds = array<i64: 1, 512>}, {transform_indices = @transform_3, window_bounds = array<i64: 512, 128>}, {transform_indices = @transform_4, window_bounds = array<i64: 512, 128>}]} {
    %c0 = arith.constant 0 : index
    %c0_0 = arith.constant 0 : index
    %0 = vector.load %arg1[%c0, %c0_0] : memref<512x128xf32, #tpu.memory_space<vmem>>, vector<512x128xf32>
    %c0_1 = arith.constant 0 : index
    %c0_2 = arith.constant 0 : index
    %1 = vector.load %arg2[%c0_1, %c0_2] : memref<128x512xf32, #tpu.memory_space<vmem>>, vector<128x128xf32>
    %c0_3 = arith.constant 0 : index
    %c128 = arith.constant 128 : index
    %2 = vector.load %arg2[%c0_3, %c128] : memref<128x512xf32, #tpu.memory_space<vmem>>, vector<128x128xf32>
    %c0_4 = arith.constant 0 : index
    %c256 = arith.constant 256 : index
    %3 = vector.load %arg2[%c0_4, %c256] : memref<128x512xf32, #tpu.memory_space<vmem>>, vector<128x256xf32>
    %c0_5 = arith.constant 0 : index
    %c0_6 = arith.constant 0 : index
    %4 = vector.load %arg3[%c0_5, %c0_6] : memref<1x512xf32, #tpu.memory_space<vmem>>, vector<1x128xf32>
    %c0_7 = arith.constant 0 : index
    %c128_8 = arith.constant 128 : index
    %5 = vector.load %arg3[%c0_7, %c128_8] : memref<1x512xf32, #tpu.memory_space<vmem>>, vector<1x128xf32>
    %c0_9 = arith.constant 0 : index
    %c256_10 = arith.constant 256 : index
    %6 = vector.load %arg3[%c0_9, %c256_10] : memref<1x512xf32, #tpu.memory_space<vmem>>, vector<1x256xf32>
    %cst = arith.constant dense<0.000000e+00> : vector<512x128xf32>
    %7 = tpu.matmul %0, %1, %cst {dimension_numbers = #tpu.dot_dimension_numbers<[1], [0], [0], [1], [0, 0, 1, 1], [], []>} : vector<512x128xf32>, vector<128x128xf32>, vector<512x128xf32> -> vector<512x128xf32>
    %8 = vector.broadcast %4 : vector<1x128xf32> to vector<512x128xf32>
    %9 = arith.addf %7, %8 : vector<512x128xf32>
    %10 = math.tanh %9 : vector<512x128xf32>
    %cst_11 = arith.constant dense<0.000000e+00> : vector<512x128xf32>
    %11 = tpu.matmul %10, %2, %cst_11 {dimension_numbers = #tpu.dot_dimension_numbers<[1], [0], [0], [1], [0, 0, 1, 1], [], []>} : vector<512x128xf32>, vector<128x128xf32>, vector<512x128xf32> -> vector<512x128xf32>
    %12 = vector.broadcast %5 : vector<1x128xf32> to vector<512x128xf32>
    %13 = arith.addf %11, %12 : vector<512x128xf32>
    %14 = math.tanh %13 : vector<512x128xf32>
    %cst_12 = arith.constant dense<0.000000e+00> : vector<512x256xf32>
    %15 = tpu.matmul %14, %3, %cst_12 {dimension_numbers = #tpu.dot_dimension_numbers<[1], [0], [0], [1], [0, 0, 1, 1], [], []>} : vector<512x128xf32>, vector<128x256xf32>, vector<512x256xf32> -> vector<512x256xf32>
    %16 = vector.broadcast %6 : vector<1x256xf32> to vector<512x256xf32>
    %17 = arith.addf %15, %16 : vector<512x256xf32>
    %18 = vector.extract_strided_slice %17 {offsets = [0, 0], sizes = [512, 128], strides = [1, 1]} : vector<512x256xf32> to vector<512x128xf32>
    %19 = vector.extract_strided_slice %17 {offsets = [0, 128], sizes = [512, 128], strides = [1, 1]} : vector<512x256xf32> to vector<512x128xf32>
    %20 = math.exp %19 : vector<512x128xf32>
    %21 = arith.mulf %0, %20 : vector<512x128xf32>
    %22 = arith.addf %21, %18 : vector<512x128xf32>
    %c0_13 = arith.constant 0 : index
    %c0_14 = arith.constant 0 : index
    %23 = vector.load %arg4[%c0_13, %c0_14] : memref<512x128xf32, #tpu.memory_space<vmem>>, vector<512x128xf32>
    tpu.vector_store %arg4[%c0_13, %c0_14], %22 {strides = array<i32>} : memref<512x128xf32, #tpu.memory_space<vmem>>, vector<512x128xf32>,
    %c0_15 = arith.constant 0 : index
    %c0_16 = arith.constant 0 : index
    %24 = vector.load %arg5[%c0_15, %c0_16] : memref<512x128xf32, #tpu.memory_space<vmem>>, vector<512x128xf32>
    tpu.vector_store %arg5[%c0_15, %c0_16], %19 {strides = array<i32>} : memref<512x128xf32, #tpu.memory_space<vmem>>, vector<512x128xf32>,
    return
  }
  func.func @transform_0(%arg0: i32) -> (i32, i32) {
    %c0_i32 = arith.constant 0 : i32
    %c0_i32_0 = arith.constant 0 : i32
    return %arg0, %c0_i32 : i32, i32
  }
  func.func @transform_1(%arg0: i32) -> (i32, i32) {
    %c0_i32 = arith.constant 0 : i32
    %c0_i32_0 = arith.constant 0 : i32
    %c0_i32_1 = arith.constant 0 : i32
    return %c0_i32, %c0_i32_0 : i32, i32
  }
  func.func @transform_2(%arg0: i32) -> (i32, i32) {
    %c0_i32 = arith.constant 0 : i32
    %c0_i32_0 = arith.constant 0 : i32
    %c0_i32_1 = arith.constant 0 : i32
    return %c0_i32, %c0_i32_0 : i32, i32
  }
  func.func @transform_3(%arg0: i32) -> (i32, i32) {
    %c0_i32 = arith.constant 0 : i32
    %c0_i32_0 = arith.constant 0 : i32
    return %arg0, %c0_i32 : i32, i32
  }
  func.func @transform_4(%arg0: i32) -> (i32, i32) {
    %c0_i32 = arith.constant 0 : i32
    %c0_i32_0 = arith.constant 0 : i32
    return %arg0, %c0_i32 : i32, i32
  }
}

</mosaic_0001>

<llo_original>
// kernel: tpu_custom_call.1
$region0: #{tpu_custom_call.1}
  #allocation0 [shape = 'u32[]', space=smem, size = 0x4, offset = 0x4, fixed_abs, tag = 'smem constant byte address 0x4 - core index']
  #allocation1 [shape = 'u32[144,128]{1,0:T(1,128)}', space=vmem, size = 0x12000, scoped, tag = 'internal scratch']
  %s0 = inlined_call_operand.hbm [shape: f32[1024,128], index: 0, kind: input, shape index: {}]
  %s1 = inlined_call_operand.hbm [shape: f32[128,512], index: 1, kind: input, shape index: {}]
  %s2 = inlined_call_operand.vmem [shape: f32[1,512], index: 2, kind: input, shape index: {}]
  %s3 = inlined_call_operand.hbm [shape: f32[1024,128], index: 3, kind: output, shape index: {0}]
  %s4 = inlined_call_operand.hbm [shape: f32[1024,128], index: 4, kind: output, shape index: {1}]
  %5 = xla_tuple %s3, %s4
  %s6 = sld [smem:[#allocation0]]
  $region61: #{tpu_custom_call.1} parent=0
    _
  %s8 = ssub.s32 1, %s6
  %s9 = scalar_select 0, %s8, %s6
  $region1: #{tpu_custom_call.1} parent=0
    #allocation2 [shape = 'u8[524288]{0}', space=vmem, size = 0x80000, scoped, tag = 'input window, operand 0']
    #allocation3 [shape = 's32[2]{0}', space=sflag, size = 0x8, scoped, tag = 'scoped memory for tpu_custom_call.1']
    #allocation4 [shape = 's32[2]{0}', space=sflag, size = 0x8, scoped, tag = 'scoped memory for tpu_custom_call.1']
    #allocation5 [shape = 'u8[262144]{0}', space=vmem, size = 0x40000, scoped, tag = 'input window, operand 1, single buffered']
    #allocation6 [shape = 's32[1]{0}', space=sflag, size = 0x4, scoped, tag = 'scoped memory for tpu_custom_call.1']
    #allocation7 [shape = 'u8[524288]{0}', space=vmem, size = 0x80000, scoped, tag = 'output window, operand 0']
    #allocation8 [shape = 'u8[524288]{0}', space=vmem, size = 0x80000, scoped, tag = 'output window, operand 1']
    #allocation9 [shape = 's32[2]{0}', space=sflag, size = 0x8, scoped, tag = 'scoped memory for tpu_custom_call.1']
    %10 = vsyncpa [#allocation3], 0
    %s11 = scalar_lea.sflag [#allocation3], 1
    %12 = vsyncpa %s11, 0
    %13 = vsyncpa [#allocation6], 0
    %14 = vsyncpa [#allocation4], 0
    %s15 = scalar_lea.sflag [#allocation4], 1
    %16 = vsyncpa %s15, 0
    %17 = vsyncpa [#allocation9], 0
    %s18 = scalar_lea.sflag [#allocation9], 1
    %19 = vsyncpa %s18, 0
    loop: start=0, step=1, limit=4
    $region2: #{tpu_custom_call.1} parent=1 // loop_pre_header
      _
    $region3: #{tpu_custom_call.1} parent=1 // loop_header
      %s21 = sphi 0, %s25
      %p22 = scmp.ge.s32.totalorder %s21, 4
      %s31 = sphi 0, %s33
      %s34 = sphi 0, %s31
      %s35 = sphi 0, %s34
      %s51 = sphi 0, %s35
      %s55 = sphi 0, %s55
      %s57 = sphi 0, %s55
      %s58 = sphi 0, %s57
      %s72 = sphi 0, %s58
      %s76 = sphi 0, %s76
      %s78 = sphi 0, %s76
      %s79 = sphi 0, %s78
      %s93 = sphi 0, %s79
      %s99 = sphi 0, %s101
      %s102 = sphi 0, %s99
      %s103 = sphi 0, %s102
      %s119 = sphi 0, %s103
      %s125 = sphi 0, %s127
      %s128 = sphi 0, %s125
      %s129 = sphi 0, %s128
      %s145 = sphi 0, %s129
    $region4: #{tpu_custom_call.1} parent=1 // loop_header_branch
      %24 = sbr.rel (%p22) target = $region8
    $region5: #{tpu_custom_call.1} parent=1 // loop_body
      %s26 = ssub.s32 %s21, 1
      %s27 = ssub.s32 %s21, 2
      %s28 = sadd.s32 %s21, 1
      %s29 = ssub.s32 %s21, %s28
      %p30 = scmp.eq.s32.totalorder %s29, 0
      %s32 = sadd.s32 %s31, 1
      %s33 = scalar_select %p30, %s31, %s32
      %p36 = pneg %p30
      %p37 = scmp.eq.s32.totalorder %s21, 1
      %p38 = por %p36, %p37
      %p39 = scmp.ne.s32.totalorder %s31, %s34
      %p40 = scmp.eq.s32.totalorder %s21, 0
      %p41 = por %p39, %p40
      %p42 = scmp.ne.s32.totalorder %s31, %s34
      %p43 = scmp.eq.s32.totalorder %s26, 1
      %p44 = por %p42, %p43
      %p45 = scmp.ne.s32.totalorder %s34, %s35
      %p46 = scmp.eq.s32.totalorder %s26, 0
      %p47 = por %p45, %p46
      %p48 = scmp.ne.s32.totalorder %s34, %s35
      %p49 = scmp.eq.s32.totalorder %s27, 1
      %p50 = por %p48, %p49
      %p52 = scmp.ne.s32.totalorder %s35, %s51
      %p53 = scmp.eq.s32.totalorder %s27, 0
      %p54 = por %p52, %p53
      %s56 = sadd.s32 %s55, 1
      %p59 = scmp.eq.s32.totalorder %s21, 1
      %p60 = scmp.ne.s32.totalorder %s55, %s57
      %p61 = scmp.eq.s32.totalorder %s21, 0
      %p62 = por %p60, %p61
      %p63 = scmp.ne.s32.totalorder %s55, %s57
      %p64 = scmp.eq.s32.totalorder %s26, 1
      %p65 = por %p63, %p64
      %p66 = scmp.ne.s32.totalorder %s57, %s58
      %p67 = scmp.eq.s32.totalorder %s26, 0
      %p68 = por %p66, %p67
      %p69 = scmp.ne.s32.totalorder %s57, %s58
      %p70 = scmp.eq.s32.totalorder %s27, 1
      %p71 = por %p69, %p70
      %p73 = scmp.ne.s32.totalorder %s58, %s72
      %p74 = scmp.eq.s32.totalorder %s27, 0
      %p75 = por %p73, %p74
      %s77 = sadd.s32 %s76, 1
      %p80 = scmp.eq.s32.totalorder %s21, 1
      %p81 = scmp.ne.s32.totalorder %s76, %s78
      %p82 = scmp.eq.s32.totalorder %s21, 0
      %p83 = por %p81, %p82
      %p84 = scmp.ne.s32.totalorder %s76, %s78
      %p85 = scmp.eq.s32.totalorder %s26, 1
      %p86 = por %p84, %p85
      %p87 = scmp.ne.s32.totalorder %s78, %s79
      %p88 = scmp.eq.s32.totalorder %s26, 0
      %p89 = por %p87, %p88
      %p90 = scmp.ne.s32.totalorder %s78, %s79
      %p91 = scmp.eq.s32.totalorder %s27, 1
      %p92 = por %p90, %p91
      %p94 = scmp.ne.s32.totalorder %s79, %s93
      %p95 = scmp.eq.s32.totalorder %s27, 0
      %p96 = por %p94, %p95
      %s97 = ssub.s32 %s21, %s28
      %p98 = scmp.eq.s32.totalorder %s97, 0
      %s100 = sadd.s32 %s99, 1
      %s101 = scalar_select %p98, %s99, %s100
      %p104 = pneg %p98
      %p105 = scmp.eq.s32.totalorder %s21, 1
      %p106 = por %p104, %p105
      %p107 = scmp.ne.s32.totalorder %s99, %s102
      %p108 = scmp.eq.s32.totalorder %s21, 0
      %p109 = por %p107, %p108
      %p110 = scmp.ne.s32.totalorder %s99, %s102
      %p111 = scmp.eq.s32.totalorder %s26, 1
      %p112 = por %p110, %p111
      %p113 = scmp.ne.s32.totalorder %s102, %s103
      %p114 = scmp.eq.s32.totalorder %s26, 0
      %p115 = por %p113, %p114
      %p116 = scmp.ne.s32.totalorder %s102, %s103
      %p117 = scmp.eq.s32.totalorder %s27, 1
      %p118 = por %p116, %p117
      %p120 = scmp.ne.s32.totalorder %s103, %s119
      %p121 = scmp.eq.s32.totalorder %s27, 0
      %p122 = por %p120, %p121
      %s123 = ssub.s32 %s21, %s28
      %p124 = scmp.eq.s32.totalorder %s123, 0
      %s126 = sadd.s32 %s125, 1
      %s127 = scalar_select %p124, %s125, %s126
      %p130 = pneg %p124
      %p131 = scmp.eq.s32.totalorder %s21, 1
      %p132 = por %p130, %p131
      %p133 = scmp.ne.s32.totalorder %s125, %s128
      %p134 = scmp.eq.s32.totalorder %s21, 0
      %p135 = por %p133, %p134
      %p136 = scmp.ne.s32.totalorder %s125, %s128
      %p137 = scmp.eq.s32.totalorder %s26, 1
      %p138 = por %p136, %p137
      %p139 = scmp.ne.s32.totalorder %s128, %s129
      %p140 = scmp.eq.s32.totalorder %s26, 0
      %p141 = por %p139, %p140
      %p142 = scmp.ne.s32.totalorder %s128, %s129
      %p143 = scmp.eq.s32.totalorder %s27, 1
      %p144 = por %p142, %p143
      %p146 = scmp.ne.s32.totalorder %s129, %s145
      %p147 = scmp.eq.s32.totalorder %s27, 0
      %p148 = por %p146, %p147
      %p149 = scmp.le.s32.totalorder 1, %s21
      %p150 = scmp.lt.s32.totalorder %s21, 3
      %p151 = pnand %p149, %p150
      %p152 = pneg %p151
      // Predicated region
      $region9: #{tpu_custom_call.1} parent=5 // pred_check
        _
      $region10: #{tpu_custom_call.1} parent=5 // pred_check_branch
        %154 = sbr.rel (%p151) target = $region12
      $region11: #{tpu_custom_call.1} parent=5 // pred_region
        %s155 = ssub.s32 %s21, 1
        // Predicated region
        $region13: #{tpu_custom_call.1} parent=11 // pred_check
          %p156 = pneg %p68
        $region14: #{tpu_custom_call.1} parent=11 // pred_check_branch
          %158 = sbr.rel (%p156) target = $region16
        $region15: #{tpu_custom_call.1} parent=11 // pred_region
          %s160 = ssub.s32 8192, 8192
          %161 = vsyncadd [#allocation6], %s160
          %s162 = sshll.u32 [#allocation5], 4
          %s163 = int_to_ptr.vmem [resolvable:$true] %s162
          %168 = dma.hbm_to_vmem [thread:$0]  %s1, 8192, %s163, [#allocation6], 512, 512, 32
        $region16: #{tpu_custom_call.1} parent=11 // pred_fallthru
          _
        // Predicated region
        $region17: #{tpu_custom_call.1} parent=11 // pred_check
          %p169 = pneg %p89
        $region18: #{tpu_custom_call.1} parent=11 // pred_check_branch
          %171 = sbr.rel (%p169) target = $region20
        $region19: #{tpu_custom_call.1} parent=11 // pred_region
          _
        $region20: #{tpu_custom_call.1} parent=11 // pred_fallthru
          _
      $region12: #{tpu_custom_call.1} parent=5 // pred_fallthru
        _
      %p172 = scmp.lt.s32.totalorder %s21, 2
      // Predicated region
      $region21: #{tpu_custom_call.1} parent=5 // pred_check
        %p173 = pneg %p172
      $region22: #{tpu_custom_call.1} parent=5 // pred_check_branch
        %175 = sbr.rel (%p173) target = $region24
      $region23: #{tpu_custom_call.1} parent=5 // pred_region
        // Predicated region
        $region25: #{tpu_custom_call.1} parent=23 // pred_check
          %p176 = pneg %p41
        $region26: #{tpu_custom_call.1} parent=23 // pred_check_branch
          %178 = sbr.rel (%p176) target = $region28
        $region27: #{tpu_custom_call.1} parent=23 // pred_region
          %s179 = sand.u32 %s31, 1
          %s180 = scalar_lea.sflag [#allocation3], %s179
          %s181 = sand.u32 %s31, 1
          %s182 = smul.addr %s181, 512
          %s183 = scalar_lea.vmem [#allocation2], %s182
          %s184 = smul.u32 64, %s21
          %s186 = ssub.s32 8192, 8192
          %187 = vsyncadd %s180, %s186
          %s188 = smul.addr %s184, 128
          %s189 = scalar_lea.hbm %s0, %s188
          %s190 = sshll.u32 %s183, 4
          %s191 = int_to_ptr.vmem [resolvable:$true] %s190
          %196 = dma.hbm_to_vmem [thread:$0]  %s189, 8192, %s191, %s180, 128, 128, 8
        $region28: #{tpu_custom_call.1} parent=23 // pred_fallthru
          _
      $region24: #{tpu_custom_call.1} parent=5 // pred_fallthru
        _
      %p197 = scmp.le.s32.totalorder 1, %s21
      %p198 = scmp.lt.s32.totalorder %s21, 3
      %p199 = pnand %p197, %p198
      %p200 = pneg %p199
      // Predicated region
      $region29: #{tpu_custom_call.1} parent=5 // pred_check
        _
      $region30: #{tpu_custom_call.1} parent=5 // pred_check_branch
        %202 = sbr.rel (%p199) target = $region32
      $region31: #{tpu_custom_call.1} parent=5 // pred_region
        %s203 = ssub.s32 %s21, 1
        %s204 = sand.u32 %s34, 1
        %s205 = scalar_lea.sflag [#allocation3], %s204
        %s206 = sand.u32 %s34, 1
        %s207 = smul.addr %s206, 512
        %s208 = scalar_lea.vmem [#allocation2], %s207
        // Predicated region
        $region33: #{tpu_custom_call.1} parent=31 // pred_check
          %p209 = pneg %p47
        $region34: #{tpu_custom_call.1} parent=31 // pred_check_branch
          %211 = sbr.rel (%p209) target = $region36
        $region35: #{tpu_custom_call.1} parent=31 // pred_region
          %212 = dma.done %s205, 8192
        $region36: #{tpu_custom_call.1} parent=31 // pred_fallthru
          _
        // Predicated region
        $region37: #{tpu_custom_call.1} parent=31 // pred_check
          %p213 = pneg %p68
        $region38: #{tpu_custom_call.1} parent=31 // pred_check_branch
          %215 = sbr.rel (%p213) target = $region40
        $region39: #{tpu_custom_call.1} parent=31 // pred_region
          %216 = dma.done [#allocation6], 8192
        $region40: #{tpu_custom_call.1} parent=31 // pred_fallthru
          _
        %s217 = sand.u32 %s34, 1
        %s218 = scalar_lea.sflag [#allocation3], %s217
        %s219 = sand.u32 %s34, 1
        %s220 = smul.addr %s219, 512
        %s221 = scalar_lea.vmem [#allocation2], %s220
        %p222 = pneg %p47
        %p223 = pneg %p44
        %p224 = pneg %p68
        %p225 = pneg %p65
        %p226 = pneg %p89
        %p227 = pneg %p86
        %p228 = pneg %p115
        %p229 = pneg %p112
        %s230 = sand.u32 %s102, 1
        %s231 = scalar_lea.sflag [#allocation4], %s230
        %s232 = sand.u32 %s102, 1
        %s233 = smul.addr %s232, 512
        %s234 = scalar_lea.vmem [#allocation7], %s233
        %p235 = pneg %p141
        %p236 = pneg %p138
        %s237 = sand.u32 %s128, 1
        %s238 = scalar_lea.sflag [#allocation9], %s237
        %s239 = sand.u32 %s128, 1
        %s240 = smul.addr %s239, 512
        %s241 = scalar_lea.vmem [#allocation8], %s240
        %s242 = smul.u32 64, %s26
        %s243 = smul.u32 64, %s26
        %s244 = smul.u32 64, %s26
        %v245 = vld [vmem:[%s208] sm:$0xff]
        %v246 = vld [vmem:[%s208 + $0x8] sm:$0xff]
        %v247 = vld [vmem:[%s208 + $0x10] sm:$0xff]
        %v248 = vld [vmem:[%s208 + $0x18] sm:$0xff]
        %v249 = vld [vmem:[%s208 + $0x20] sm:$0xff]
        %v250 = vld [vmem:[%s208 + $0x28] sm:$0xff]
        %v251 = vld [vmem:[%s208 + $0x30] sm:$0xff]
        %v252 = vld [vmem:[%s208 + $0x38] sm:$0xff]
        %v253 = vld [vmem:[%s208 + $0x40] sm:$0xff]
        %v254 = vld [vmem:[%s208 + $0x48] sm:$0xff]
        %v255 = vld [vmem:[%s208 + $0x50] sm:$0xff]
        %v256 = vld [vmem:[%s208 + $0x58] sm:$0xff]
        %v257 = vld [vmem:[%s208 + $0x60] sm:$0xff]
        %v258 = vld [vmem:[%s208 + $0x68] sm:$0xff]
        %v259 = vld [vmem:[%s208 + $0x70] sm:$0xff]
        %v260 = vld [vmem:[%s208 + $0x78] sm:$0xff]
        %v261 = vld [vmem:[%s208 + $0x80] sm:$0xff]
        %v262 = vld [vmem:[%s208 + $0x88] sm:$0xff]
        %v263 = vld [vmem:[%s208 + $0x90] sm:$0xff]
        %v264 = vld [vmem:[%s208 + $0x98] sm:$0xff]
        %v265 = vld [vmem:[%s208 + $0xa0] sm:$0xff]
        %v266 = vld [vmem:[%s208 + $0xa8] sm:$0xff]
        %v267 = vld [vmem:[%s208 + $0xb0] sm:$0xff]
        %v268 = vld [vmem:[%s208 + $0xb8] sm:$0xff]
        %v269 = vld [vmem:[%s208 + $0xc0] sm:$0xff]
        %v270 = vld [vmem:[%s208 + $0xc8] sm:$0xff]
        %v271 = vld [vmem:[%s208 + $0xd0] sm:$0xff]
        %v272 = vld [vmem:[%s208 + $0xd8] sm:$0xff]
        %v273 = vld [vmem:[%s208 + $0xe0] sm:$0xff]
        %v274 = vld [vmem:[%s208 + $0xe8] sm:$0xff]
        %v275 = vld [vmem:[%s208 + $0xf0] sm:$0xff]
        %v276 = vld [vmem:[%s208 + $0xf8] sm:$0xff]
        %v277 = vld [vmem:[%s208 + $0x100] sm:$0xff]
        %v278 = vld [vmem:[%s208 + $0x108] sm:$0xff]
        %v279 = vld [vmem:[%s208 + $0x110] sm:$0xff]
        %v280 = vld [vmem:[%s208 + $0x118] sm:$0xff]
        %v281 = vld [vmem:[%s208 + $0x120] sm:$0xff]
        %v282 = vld [vmem:[%s208 + $0x128] sm:$0xff]
        %v283 = vld [vmem:[%s208 + $0x130] sm:$0xff]
        %v284 = vld [vmem:[%s208 + $0x138] sm:$0xff]
        %v285 = vld [vmem:[%s208 + $0x140] sm:$0xff]
        %v286 = vld [vmem:[%s208 + $0x148] sm:$0xff]
        %v287 = vld [vmem:[%s208 + $0x150] sm:$0xff]
        %v288 = vld [vmem:[%s208 + $0x158] sm:$0xff]
        %v289 = vld [vmem:[%s208 + $0x160] sm:$0xff]
        %v290 = vld [vmem:[%s208 + $0x168] sm:$0xff]
        %v291 = vld [vmem:[%s208 + $0x170] sm:$0xff]
        %v292 = vld [vmem:[%s208 + $0x178] sm:$0xff]
        %v293 = vld [vmem:[%s208 + $0x180] sm:$0xff]
        %v294 = vld [vmem:[%s208 + $0x188] sm:$0xff]
        %v295 = vld [vmem:[%s208 + $0x190] sm:$0xff]
        %v296 = vld [vmem:[%s208 + $0x198] sm:$0xff]
        %v297 = vld [vmem:[%s208 + $0x1a0] sm:$0xff]
        %v298 = vld [vmem:[%s208 + $0x1a8] sm:$0xff]
        %v299 = vld [vmem:[%s208 + $0x1b0] sm:$0xff]
        %v300 = vld [vmem:[%s208 + $0x1b8] sm:$0xff]
        %v301 = vld [vmem:[%s208 + $0x1c0] sm:$0xff]
        %v302 = vld [vmem:[%s208 + $0x1c8] sm:$0xff]
        %v303 = vld [vmem:[%s208 + $0x1d0] sm:$0xff]
        %v304 = vld [vmem:[%s208 + $0x1d8] sm:$0xff]
        %v305 = vld [vmem:[%s208 + $0x1e0] sm:$0xff]
        %v306 = vld [vmem:[%s208 + $0x1e8] sm:$0xff]
        %v307 = vld [vmem:[%s208 + $0x1f0] sm:$0xff]
        %v308 = vld [vmem:[%s208 + $0x1f8] sm:$0xff]
        %v309 = vld [vmem:[#allocation5] sm:$0xff]
        %v310 = vld [vmem:[#allocation5 + $0x20] sm:$0xff]
        %v311 = vld [vmem:[#allocation5 + $0x40] sm:$0xff]
        %v312 = vld [vmem:[#allocation5 + $0x60] sm:$0xff]
        %v313 = vld [vmem:[#allocation5 + $0x80] sm:$0xff]
        %v314 = vld [vmem:[#allocation5 + $0xa0] sm:$0xff]
        %v315 = vld [vmem:[#allocation5 + $0xc0] sm:$0xff]
        %v316 = vld [vmem:[#allocation5 + $0xe0] sm:$0xff]
        %v317 = vld [vmem:[#allocation5 + $0x100] sm:$0xff]
        %v318 = vld [vmem:[#allocation5 + $0x120] sm:$0xff]
        %v319 = vld [vmem:[#allocation5 + $0x140] sm:$0xff]
        %v320 = vld [vmem:[#allocation5 + $0x160] sm:$0xff]
        %v321 = vld [vmem:[#allocation5 + $0x180] sm:$0xff]
        %v322 = vld [vmem:[#allocation5 + $0x1a0] sm:$0xff]
        %v323 = vld [vmem:[#allocation5 + $0x1c0] sm:$0xff]
        %v324 = vld [vmem:[#allocation5 + $0x1e0] sm:$0xff]
        %v325 = vld [vmem:[#allocation5 + $0x8] sm:$0xff]
        %v326 = vld [vmem:[#allocation5 + $0x28] sm:$0xff]
        %v327 = vld [vmem:[#allocation5 + $0x48] sm:$0xff]
        %v328 = vld [vmem:[#allocation5 + $0x68] sm:$0xff]
        %v329 = vld [vmem:[#allocation5 + $0x88] sm:$0xff]
        %v330 = vld [vmem:[#allocation5 + $0xa8] sm:$0xff]
        %v331 = vld [vmem:[#allocation5 + $0xc8] sm:$0xff]
        %v332 = vld [vmem:[#allocation5 + $0xe8] sm:$0xff]
        %v333 = vld [vmem:[#allocation5 + $0x108] sm:$0xff]
        %v334 = vld [vmem:[#allocation5 + $0x128] sm:$0xff]
        %v335 = vld [vmem:[#allocation5 + $0x148] sm:$0xff]
        %v336 = vld [vmem:[#allocation5 + $0x168] sm:$0xff]
        %v337 = vld [vmem:[#allocation5 + $0x188] sm:$0xff]
        %v338 = vld [vmem:[#allocation5 + $0x1a8] sm:$0xff]
        %v339 = vld [vmem:[#allocation5 + $0x1c8] sm:$0xff]
        %v340 = vld [vmem:[#allocation5 + $0x1e8] sm:$0xff]
        %v341 = vld [vmem:[#allocation5 + $0x10] sm:$0xff]
        %v342 = vld [vmem:[#allocation5 + $0x18] sm:$0xff]
        %v343 = vld [vmem:[#allocation5 + $0x30] sm:$0xff]
        %v344 = vld [vmem:[#allocation5 + $0x38] sm:$0xff]
        %v345 = vld [vmem:[#allocation5 + $0x50] sm:$0xff]
        %v346 = vld [vmem:[#allocation5 + $0x58] sm:$0xff]
        %v347 = vld [vmem:[#allocation5 + $0x70] sm:$0xff]
        %v348 = vld [vmem:[#allocation5 + $0x78] sm:$0xff]
        %v349 = vld [vmem:[#allocation5 + $0x90] sm:$0xff]
        %v350 = vld [vmem:[#allocation5 + $0x98] sm:$0xff]
        %v351 = vld [vmem:[#allocation5 + $0xb0] sm:$0xff]
        %v352 = vld [vmem:[#allocation5 + $0xb8] sm:$0xff]
        %v353 = vld [vmem:[#allocation5 + $0xd0] sm:$0xff]
        %v354 = vld [vmem:[#allocation5 + $0xd8] sm:$0xff]
        %v355 = vld [vmem:[#allocation5 + $0xf0] sm:$0xff]
        %v356 = vld [vmem:[#allocation5 + $0xf8] sm:$0xff]
        %v357 = vld [vmem:[#allocation5 + $0x110] sm:$0xff]
        %v358 = vld [vmem:[#allocation5 + $0x118] sm:$0xff]
        %v359 = vld [vmem:[#allocation5 + $0x130] sm:$0xff]
        %v360 = vld [vmem:[#allocation5 + $0x138] sm:$0xff]
        %v361 = vld [vmem:[#allocation5 + $0x150] sm:$0xff]
        %v362 = vld [vmem:[#allocation5 + $0x158] sm:$0xff]
        %v363 = vld [vmem:[#allocation5 + $0x170] sm:$0xff]
        %v364 = vld [vmem:[#allocation5 + $0x178] sm:$0xff]
        %v365 = vld [vmem:[#allocation5 + $0x190] sm:$0xff]
        %v366 = vld [vmem:[#allocation5 + $0x198] sm:$0xff]
        %v367 = vld [vmem:[#allocation5 + $0x1b0] sm:$0xff]
        %v368 = vld [vmem:[#allocation5 + $0x1b8] sm:$0xff]
        %v369 = vld [vmem:[#allocation5 + $0x1d0] sm:$0xff]
        %v370 = vld [vmem:[#allocation5 + $0x1d8] sm:$0xff]
        %v371 = vld [vmem:[#allocation5 + $0x1f0] sm:$0xff]
        %v372 = vld [vmem:[#allocation5 + $0x1f8] sm:$0xff]
        %v373 = vld [vmem:[%s2] sm:$0x1]
        %v374 = vld [vmem:[%s2 + $0x1] sm:$0x1]
        %v375 = vld [vmem:[%s2 + $0x2] sm:$0x3]
        %v377 = vlaneseq
        %v378 = vshrl.u32 %v377, 7
        %v379 = vsub.s32 0, %v378
        %v380 = vrot.slane %v373, %v379
        %382 = vmatprep.subr.mxu0 0.0
        %383 = vmatpush1.msra.mxu0 %v309
        %384 = vmatprep.subr.mxu0 0.0
        %385 = vmatpush1.msra.mxu0 %v310
        %386 = vmatprep.subr.mxu0 0.0
        %387 = vmatpush1.msra.mxu0 %v311
        %388 = vmatprep.subr.mxu0 0.0
        %389 = vmatpush1.msra.mxu0 %v312
        %390 = vmatprep.subr.mxu0 0.0
        %391 = vmatpush1.msra.mxu0 %v313
        %392 = vmatprep.subr.mxu0 0.0
        %393 = vmatpush1.msra.mxu0 %v314
        %394 = vmatprep.subr.mxu0 0.0
        %395 = vmatpush1.msra.mxu0 %v315
        %396 = vmatprep.subr.mxu0 0.0
        %397 = vmatpush1.msra.mxu0 %v316
        %398 = vmatprep.subr.mxu0 0.0
        %399 = vmatpush1.msra.mxu0 %v317
        %400 = vmatprep.subr.mxu0 0.0
        %401 = vmatpush1.msra.mxu0 %v318
        %402 = vmatprep.subr.mxu0 0.0
        %403 = vmatpush1.msra.mxu0 %v319
        %404 = vmatprep.subr.mxu0 0.0
        %405 = vmatpush1.msra.mxu0 %v320
        %406 = vmatprep.subr.mxu0 0.0
        %407 = vmatpush1.msra.mxu0 %v321
        %408 = vmatprep.subr.mxu0 0.0
        %409 = vmatpush1.msra.mxu0 %v322
        %410 = vmatprep.subr.mxu0 0.0
        %411 = vmatpush1.msra.mxu0 %v323
        %412 = vmatprep.subr.mxu0 0.0
        %413 = vmatpush1.msra.mxu0 %v324
        %414 = vmatprep.subr.mxu0 0.0
        %415 = vmatpush1.msra.mxu0 0.0
        %416 = vmatprep.subr.mxu0 0.0
        %417 = vmatpush1.msra.mxu0 0.0
        %418 = vmatprep.subr.mxu0 0.0
        %419 = vmatpush1.msra.mxu0 0.0
        %420 = vmatprep.subr.mxu0 0.0
        %421 = vmatpush1.msra.mxu0 0.0
        %422 = vmatprep.subr.mxu0 0.0
        %423 = vmatpush1.msra.mxu0 0.0
        %424 = vmatprep.subr.mxu0 0.0
        %425 = vmatpush1.msra.mxu0 0.0
        %426 = vmatprep.subr.mxu0 0.0
        %427 = vmatpush1.msra.mxu0 0.0
        %428 = vmatprep.subr.mxu0 0.0
        %429 = vmatpush1.msra.mxu0 0.0
        %430 = vmatprep.subr.mxu0 0.0
        %431 = vmatpush1.msra.mxu0 0.0
        %432 = vmatprep.subr.mxu0 0.0
        %433 = vmatpush1.msra.mxu0 0.0
        %434 = vmatprep.subr.mxu0 0.0
        %435 = vmatpush1.msra.mxu0 0.0
        %436 = vmatprep.subr.mxu0 0.0
        %437 = vmatpush1.msra.mxu0 0.0
        %438 = vmatprep.subr.mxu0 0.0
        %439 = vmatpush1.msra.mxu0 0.0
        %440 = vmatprep.subr.mxu0 0.0
        %441 = vmatpush1.msra.mxu0 0.0
        %442 = vmatprep.subr.mxu0 0.0
        %443 = vmatpush1.msra.mxu0 0.0
        %444 = vmatprep.subr.mxu0 0.0
        %445 = vmatpush1.msra.mxu0 0.0
        %446 = vmatprep.mubr.f32.mxu0 0.0
        %447 = vmatmul.mubr.f32.gmra.mrb[0].mxu0 %v245
        %v448 = vpop.f32.mrb[0].mxu0
        %v449 = vadd.f32 %v380, %v448
        %v450 = vpop.f32.mrb[0].mxu0
        %451 = vmatprep.mubr.f32.mxu0 0.0
        %452 = vmatmul.mubr.f32.gmra.mrb[0].mxu0 %v246
        %v453 = vpop.f32.mrb[0].mxu0
        %v454 = vadd.f32 %v380, %v453
        %v455 = vpop.f32.mrb[0].mxu0
        %456 = vmatprep.mubr.f32.mxu0 0.0
        %457 = vmatmul.mubr.f32.gmra.mrb[0].mxu0 %v247
        %v458 = vpop.f32.mrb[0].mxu0
        %v459 = vadd.f32 %v380, %v458
        %v460 = vpop.f32.mrb[0].mxu0
        %461 = vmatprep.mubr.f32.mxu0 0.0
        %462 = vmatmul.mubr.f32.gmra.mrb[0].mxu0 %v248
        %v463 = vpop.f32.mrb[0].mxu0
        %v464 = vadd.f32 %v380, %v463
        %v465 = vpop.f32.mrb[0].mxu0
        %466 = vmatprep.mubr.f32.mxu0 0.0
        %467 = vmatmul.mubr.f32.gmra.mrb[0].mxu0 %v249
        %v468 = vpop.f32.mrb[0].mxu0
        %v469 = vadd.f32 %v380, %v468
        %v470 = vpop.f32.mrb[0].mxu0
        %471 = vmatprep.mubr.f32.mxu0 0.0
        %472 = vmatmul.mubr.f32.gmra.mrb[0].mxu0 %v250
        %v473 = vpop.f32.mrb[0].mxu0
        %v474 = vadd.f32 %v380, %v473
        %v475 = vpop.f32.mrb[0].mxu0
        %476 = vmatprep.mubr.f32.mxu0 0.0
        %477 = vmatmul.mubr.f32.gmra.mrb[0].mxu0 %v251
        %v478 = vpop.f32.mrb[0].mxu0
        %v479 = vadd.f32 %v380, %v478
        %v480 = vpop.f32.mrb[0].mxu0
        %481 = vmatprep.mubr.f32.mxu0 0.0
        %482 = vmatmul.mubr.f32.gmra.mrb[0].mxu0 %v252
        %v483 = vpop.f32.mrb[0].mxu0
        %v484 = vadd.f32 %v380, %v483
        %v485 = vpop.f32.mrb[0].mxu0
        %486 = vmatprep.mubr.f32.mxu0 0.0
        %487 = vmatmul.mubr.f32.gmra.mrb[0].mxu0 %v253
        %v488 = vpop.f32.mrb[0].mxu0
        %v489 = vadd.f32 %v380, %v488
        %v490 = vpop.f32.mrb[0].mxu0
        %491 = vmatprep.mubr.f32.mxu0 0.0
        %492 = vmatmul.mubr.f32.gmra.mrb[0].mxu0 %v254
        %v493 = vpop.f32.mrb[0].mxu0
        %v494 = vadd.f32 %v380, %v493
        %v495 = vpop.f32.mrb[0].mxu0
        %496 = vmatprep.mubr.f32.mxu0 0.0
        %497 = vmatmul.mubr.f32.gmra.mrb[0].mxu0 %v255
        %v498 = vpop.f32.mrb[0].mxu0
        %v499 = vadd.f32 %v380, %v498
        %v500 = vpop.f32.mrb[0].mxu0
        %501 = vmatprep.mubr.f32.mxu0 0.0
        %502 = vmatmul.mubr.f32.gmra.mrb[0].mxu0 %v256
        %v503 = vpop.f32.mrb[0].mxu0
        %v504 = vadd.f32 %v380, %v503
        %v505 = vpop.f32.mrb[0].mxu0
        %506 = vmatprep.mubr.f32.mxu0 0.0
        %507 = vmatmul.mubr.f32.gmra.mrb[0].mxu0 %v257
        %v508 = vpop.f32.mrb[0].mxu0
        %v509 = vadd.f32 %v380, %v508
        %v510 = vpop.f32.mrb[0].mxu0
        %511 = vmatprep.mubr.f32.mxu0 0.0
        %512 = vmatmul.mubr.f32.gmra.mrb[0].mxu0 %v258
        %v513 = vpop.f32.mrb[0].mxu0
        %v514 = vadd.f32 %v380, %v513
        %v515 = vpop.f32.mrb[0].mxu0
        %516 = vmatprep.mubr.f32.mxu0 0.0
        %517 = vmatmul.mubr.f32.gmra.mrb[0].mxu0 %v259
        %v518 = vpop.f32.mrb[0].mxu0
        %v519 = vadd.f32 %v380, %v518
        %v520 = vpop.f32.mrb[0].mxu0
        %521 = vmatprep.mubr.f32.mxu0 0.0
        %522 = vmatmul.mubr.f32.gmra.mrb[0].mxu0 %v260
        %v523 = vpop.f32.mrb[0].mxu0
        %v524 = vadd.f32 %v380, %v523
        %v525 = vpop.f32.mrb[0].mxu0
        %526 = vmatprep.mubr.f32.mxu0 0.0
        %527 = vmatmul.mubr.f32.gmra.mrb[0].mxu0 %v261
        %v528 = vpop.f32.mrb[0].mxu0
        %v529 = vadd.f32 %v380, %v528
        %v530 = vpop.f32.mrb[0].mxu0
        %531 = vmatprep.mubr.f32.mxu0 0.0
        %532 = vmatmul.mubr.f32.gmra.mrb[0].mxu0 %v262
        %v533 = vpop.f32.mrb[0].mxu0
        %v534 = vadd.f32 %v380, %v533
        %v535 = vpop.f32.mrb[0].mxu0
        %536 = vmatprep.mubr.f32.mxu0 0.0
        %537 = vmatmul.mubr.f32.gmra.mrb[0].mxu0 %v263
        %v538 = vpop.f32.mrb[0].mxu0
        %v539 = vadd.f32 %v380, %v538
        %v540 = vpop.f32.mrb[0].mxu0
        %541 = vmatprep.mubr.f32.mxu0 0.0
        %542 = vmatmul.mubr.f32.gmra.mrb[0].mxu0 %v264
        %v543 = vpop.f32.mrb[0].mxu0
        %v544 = vadd.f32 %v380, %v543
        %v545 = vpop.f32.mrb[0].mxu0
        %546 = vmatprep.mubr.f32.mxu0 0.0
        %547 = vmatmul.mubr.f32.gmra.mrb[0].mxu0 %v265
        %v548 = vpop.f32.mrb[0].mxu0
        %v549 = vadd.f32 %v380, %v548
        %v550 = vpop.f32.mrb[0].mxu0
        %551 = vmatprep.mubr.f32.mxu0 0.0
        %552 = vmatmul.mubr.f32.gmra.mrb[0].mxu0 %v266
        %v553 = vpop.f32.mrb[0].mxu0
        %v554 = vadd.f32 %v380, %v553
        %v555 = vpop.f32.mrb[0].mxu0
        %556 = vmatprep.mubr.f32.mxu0 0.0
        %557 = vmatmul.mubr.f32.gmra.mrb[0].mxu0 %v267
        %v558 = vpop.f32.mrb[0].mxu0
        %v559 = vadd.f32 %v380, %v558
        %v560 = vpop.f32.mrb[0].mxu0
        %561 = vmatprep.mubr.f32.mxu0 0.0
        %562 = vmatmul.mubr.f32.gmra.mrb[0].mxu0 %v268
        %v563 = vpop.f32.mrb[0].mxu0
        %v564 = vadd.f32 %v380, %v563
        %v565 = vpop.f32.mrb[0].mxu0
        %566 = vmatprep.mubr.f32.mxu0 0.0
        %567 = vmatmul.mubr.f32.gmra.mrb[0].mxu0 %v269
        %v568 = vpop.f32.mrb[0].mxu0
        %v569 = vadd.f32 %v380, %v568
        %v570 = vpop.f32.mrb[0].mxu0
        %571 = vmatprep.mubr.f32.mxu0 0.0
        %572 = vmatmul.mubr.f32.gmra.mrb[0].mxu0 %v270
        %v573 = vpop.f32.mrb[0].mxu0
        %v574 = vadd.f32 %v380, %v573
        %v575 = vpop.f32.mrb[0].mxu0
        %576 = vmatprep.mubr.f32.mxu0 0.0
        %577 = vmatmul.mubr.f32.gmra.mrb[0].mxu0 %v271
        %v578 = vpop.f32.mrb[0].mxu0
        %v579 = vadd.f32 %v380, %v578
        %v580 = vpop.f32.mrb[0].mxu0
        %581 = vmatprep.mubr.f32.mxu0 0.0
        %582 = vmatmul.mubr.f32.gmra.mrb[0].mxu0 %v272
        %v583 = vpop.f32.mrb[0].mxu0
        %v584 = vadd.f32 %v380, %v583
        %v585 = vpop.f32.mrb[0].mxu0
        %586 = vmatprep.mubr.f32.mxu0 0.0
        %587 = vmatmul.mubr.f32.gmra.mrb[0].mxu0 %v273
        %v588 = vpop.f32.mrb[0].mxu0
        %v589 = vadd.f32 %v380, %v588
        %v590 = vpop.f32.mrb[0].mxu0
        %591 = vmatprep.mubr.f32.mxu0 0.0
        %592 = vmatmul.mubr.f32.gmra.mrb[0].mxu0 %v274
        %v593 = vpop.f32.mrb[0].mxu0
        %v594 = vadd.f32 %v380, %v593
        %v595 = vpop.f32.mrb[0].mxu0
        %596 = vmatprep.mubr.f32.mxu0 0.0
        %597 = vmatmul.mubr.f32.gmra.mrb[0].mxu0 %v275
        %v598 = vpop.f32.mrb[0].mxu0
        %v599 = vadd.f32 %v380, %v598
        %v600 = vpop.f32.mrb[0].mxu0
        %601 = vmatprep.mubr.f32.mxu0 0.0
        %602 = vmatmul.mubr.f32.gmra.mrb[0].mxu0 %v276
        %v603 = vpop.f32.mrb[0].mxu0
        %v604 = vadd.f32 %v380, %v603
        %v605 = vpop.f32.mrb[0].mxu0
        %606 = vmatprep.mubr.f32.mxu0 0.0
        %607 = vmatmul.mubr.f32.gmra.mrb[0].mxu0 %v277
        %v608 = vpop.f32.mrb[0].mxu0
        %v609 = vadd.f32 %v380, %v608
        %v610 = vpop.f32.mrb[0].mxu0
        %611 = vmatprep.mubr.f32.mxu0 0.0
        %612 = vmatmul.mubr.f32.gmra.mrb[0].mxu0 %v278
        %v613 = vpop.f32.mrb[0].mxu0
        %v614 = vadd.f32 %v380, %v613
        %v615 = vpop.f32.mrb[0].mxu0
        %616 = vmatprep.mubr.f32.mxu0 0.0
        %617 = vmatmul.mubr.f32.gmra.mrb[0].mxu0 %v279
        %v618 = vpop.f32.mrb[0].mxu0
        %v619 = vadd.f32 %v380, %v618
        %v620 = vpop.f32.mrb[0].mxu0
        %621 = vmatprep.mubr.f32.mxu0 0.0
        %622 = vmatmul.mubr.f32.gmra.mrb[0].mxu0 %v280
        %v623 = vpop.f32.mrb[0].mxu0
        %v624 = vadd.f32 %v380, %v623
        %v625 = vpop.f32.mrb[0].mxu0
        %626 = vmatprep.mubr.f32.mxu0 0.0
        %627 = vmatmul.mubr.f32.gmra.mrb[0].mxu0 %v281
        %v628 = vpop.f32.mrb[0].mxu0
        %v629 = vadd.f32 %v380, %v628
        %v630 = vpop.f32.mrb[0].mxu0
        %631 = vmatprep.mubr.f32.mxu0 0.0
        %632 = vmatmul.mubr.f32.gmra.mrb[0].mxu0 %v282
        %v633 = vpop.f32.mrb[0].mxu0
        %v634 = vadd.f32 %v380, %v633
        %v635 = vpop.f32.mrb[0].mxu0
        %636 = vmatprep.mubr.f32.mxu0 0.0
        %637 = vmatmul.mubr.f32.gmra.mrb[0].mxu0 %v283
        %v638 = vpop.f32.mrb[0].mxu0
        %v639 = vadd.f32 %v380, %v638
        %v640 = vpop.f32.mrb[0].mxu0
        %641 = vmatprep.mubr.f32.mxu0 0.0
        %642 = vmatmul.mubr.f32.gmra.mrb[0].mxu0 %v284
        %v643 = vpop.f32.mrb[0].mxu0
        %v644 = vadd.f32 %v380, %v643
        %v645 = vpop.f32.mrb[0].mxu0
        %646 = vmatprep.mubr.f32.mxu0 0.0
        %647 = vmatmul.mubr.f32.gmra.mrb[0].mxu0 %v285
        %v648 = vpop.f32.mrb[0].mxu0
        %v649 = vadd.f32 %v380, %v648
        %v650 = vpop.f32.mrb[0].mxu0
        %651 = vmatprep.mubr.f32.mxu0 0.0
        %652 = vmatmul.mubr.f32.gmra.mrb[0].mxu0 %v286
        %v653 = vpop.f32.mrb[0].mxu0
        %v654 = vadd.f32 %v380, %v653
        %v655 = vpop.f32.mrb[0].mxu0
        %656 = vmatprep.mubr.f32.mxu0 0.0
        %657 = vmatmul.mubr.f32.gmra.mrb[0].mxu0 %v287
        %v658 = vpop.f32.mrb[0].mxu0
        %v659 = vadd.f32 %v380, %v658
        %v660 = vpop.f32.mrb[0].mxu0
        %661 = vmatprep.mubr.f32.mxu0 0.0
        %662 = vmatmul.mubr.f32.gmra.mrb[0].mxu0 %v288
        %v663 = vpop.f32.mrb[0].mxu0
        %v664 = vadd.f32 %v380, %v663
        %v665 = vpop.f32.mrb[0].mxu0
        %666 = vmatprep.mubr.f32.mxu0 0.0
        %667 = vmatmul.mubr.f32.gmra.mrb[0].mxu0 %v289
        %v668 = vpop.f32.mrb[0].mxu0
        %v669 = vadd.f32 %v380, %v668
        %v670 = vpop.f32.mrb[0].mxu0
        %671 = vmatprep.mubr.f32.mxu0 0.0
        %672 = vmatmul.mubr.f32.gmra.mrb[0].mxu0 %v290
        %v673 = vpop.f32.mrb[0].mxu0
        %v674 = vadd.f32 %v380, %v673
        %v675 = vpop.f32.mrb[0].mxu0
        %676 = vmatprep.mubr.f32.mxu0 0.0
        %677 = vmatmul.mubr.f32.gmra.mrb[0].mxu0 %v291
        %v678 = vpop.f32.mrb[0].mxu0
        %v679 = vadd.f32 %v380, %v678
        %v680 = vpop.f32.mrb[0].mxu0
        %681 = vmatprep.mubr.f32.mxu0 0.0
        %682 = vmatmul.mubr.f32.gmra.mrb[0].mxu0 %v292
        %v683 = vpop.f32.mrb[0].mxu0
        %v684 = vadd.f32 %v380, %v683
        %v685 = vpop.f32.mrb[0].mxu0
        %686 = vmatprep.mubr.f32.mxu0 0.0
        %687 = vmatmul.mubr.f32.gmra.mrb[0].mxu0 %v293
        %v688 = vpop.f32.mrb[0].mxu0
        %v689 = vadd.f32 %v380, %v688
        %v690 = vpop.f32.mrb[0].mxu0
        %691 = vmatprep.mubr.f32.mxu0 0.0
        %692 = vmatmul.mubr.f32.gmra.mrb[0].mxu0 %v294
        %v693 = vpop.f32.mrb[0].mxu0
        %v694 = vadd.f32 %v380, %v693
        %v695 = vpop.f32.mrb[0].mxu0
        %696 = vmatprep.mubr.f32.mxu0 0.0
        %697 = vmatmul.mubr.f32.gmra.mrb[0].mxu0 %v295
        %v698 = vpop.f32.mrb[0].mxu0
        %v699 = vadd.f32 %v380, %v698
        %v700 = vpop.f32.mrb[0].mxu0
        %701 = vmatprep.mubr.f32.mxu0 0.0
        %702 = vmatmul.mubr.f32.gmra.mrb[0].mxu0 %v296
        %v703 = vpop.f32.mrb[0].mxu0
        %v704 = vadd.f32 %v380, %v703
        %v705 = vpop.f32.mrb[0].mxu0
        %706 = vmatprep.mubr.f32.mxu0 0.0
        %707 = vmatmul.mubr.f32.gmra.mrb[0].mxu0 %v297
        %v708 = vpop.f32.mrb[0].mxu0
        %v709 = vadd.f32 %v380, %v708
        %v710 = vpop.f32.mrb[0].mxu0
        %711 = vmatprep.mubr.f32.mxu0 0.0
        %712 = vmatmul.mubr.f32.gmra.mrb[0].mxu0 %v298
        %v713 = vpop.f32.mrb[0].mxu0
        %v714 = vadd.f32 %v380, %v713
        %v715 = vpop.f32.mrb[0].mxu0
        %716 = vmatprep.mubr.f32.mxu0 0.0
        %717 = vmatmul.mubr.f32.gmra.mrb[0].mxu0 %v299
        %v718 = vpop.f32.mrb[0].mxu0
        %v719 = vadd.f32 %v380, %v718
        %v720 = vpop.f32.mrb[0].mxu0
        %721 = vmatprep.mubr.f32.mxu0 0.0
        %722 = vmatmul.mubr.f32.gmra.mrb[0].mxu0 %v300
        %v723 = vpop.f32.mrb[0].mxu0
        %v724 = vadd.f32 %v380, %v723
        %v725 = vpop.f32.mrb[0].mxu0
        %726 = vmatprep.mubr.f32.mxu0 0.0
        %727 = vmatmul.mubr.f32.gmra.mrb[0].mxu0 %v301
        %v728 = vpop.f32.mrb[0].mxu0
        %v729 = vadd.f32 %v380, %v728
        %v730 = vpop.f32.mrb[0].mxu0
        %731 = vmatprep.mubr.f32.mxu0 0.0
        %732 = vmatmul.mubr.f32.gmra.mrb[0].mxu0 %v302
        %v733 = vpop.f32.mrb[0].mxu0
        %v734 = vadd.f32 %v380, %v733
        %v735 = vpop.f32.mrb[0].mxu0
        %736 = vmatprep.mubr.f32.mxu0 0.0
        %737 = vmatmul.mubr.f32.gmra.mrb[0].mxu0 %v303
        %v738 = vpop.f32.mrb[0].mxu0
        %v739 = vadd.f32 %v380, %v738
        %v740 = vpop.f32.mrb[0].mxu0
        %741 = vmatprep.mubr.f32.mxu0 0.0
        %742 = vmatmul.mubr.f32.gmra.mrb[0].mxu0 %v304
        %v743 = vpop.f32.mrb[0].mxu0
        %v744 = vadd.f32 %v380, %v743
        %v745 = vpop.f32.mrb[0].mxu0
        %746 = vmatprep.mubr.f32.mxu0 0.0
        %747 = vmatmul.mubr.f32.gmra.mrb[0].mxu0 %v305
        %v748 = vpop.f32.mrb[0].mxu0
        %v749 = vadd.f32 %v380, %v748
        %v750 = vpop.f32.mrb[0].mxu0
        %751 = vmatprep.mubr.f32.mxu0 0.0
        %752 = vmatmul.mubr.f32.gmra.mrb[0].mxu0 %v306
        %v753 = vpop.f32.mrb[0].mxu0
        %v754 = vadd.f32 %v380, %v753
        %v755 = vpop.f32.mrb[0].mxu0
        %756 = vmatprep.mubr.f32.mxu0 0.0
        %757 = vmatmul.mubr.f32.gmra.mrb[0].mxu0 %v307
        %v758 = vpop.f32.mrb[0].mxu0
        %v759 = vadd.f32 %v380, %v758
        %v760 = vpop.f32.mrb[0].mxu0
        %761 = vmatprep.mubr.f32.mxu0 0.0
        %762 = vmatmul.mubr.f32.gmra.mrb[0].mxu0 %v308
        %v763 = vpop.f32.mrb[0].mxu0
        %v764 = vadd.f32 %v380, %v763
        %v765 = vpop.f32.mrb[0].mxu0
        %766 = vdwg.mxu0
        %v767 = vtanh.pop %v449
        %v768 = vtanh.pop %v454
        %v769 = vtanh.pop %v459
        %v770 = vtanh.pop %v464
        %v771 = vtanh.pop %v469
        %v772 = vtanh.pop %v474
        %v773 = vtanh.pop %v479
        %v774 = vtanh.pop %v484
        %v775 = vtanh.pop %v489
        %v776 = vtanh.pop %v494
        %v777 = vtanh.pop %v499
        %v778 = vtanh.pop %v504
        %v779 = vtanh.pop %v509
        %v780 = vtanh.pop %v514
        %v781 = vtanh.pop %v519
        %v782 = vtanh.pop %v524
        %v783 = vtanh.pop %v529
        %v784 = vtanh.pop %v534
        %v785 = vtanh.pop %v539
        %v786 = vtanh.pop %v544
        %v787 = vtanh.pop %v549
        %v788 = vtanh.pop %v554
        %v789 = vtanh.pop %v559
        %v790 = vtanh.pop %v564
        %v791 = vtanh.pop %v569
        %v792 = vtanh.pop %v574
        %v793 = vtanh.pop %v579
        %v794 = vtanh.pop %v584
        %v795 = vtanh.pop %v589
        %v796 = vtanh.pop %v594
        %v797 = vtanh.pop %v599
        %v798 = vtanh.pop %v604
        %v799 = vtanh.pop %v609
        %v800 = vtanh.pop %v614
        %v801 = vtanh.pop %v619
        %v802 = vtanh.pop %v624
        %v803 = vtanh.pop %v629
        %v804 = vtanh.pop %v634
        %v805 = vtanh.pop %v639
        %v806 = vtanh.pop %v644
        %v807 = vtanh.pop %v649
        %v808 = vtanh.pop %v654
        %v809 = vtanh.pop %v659
        %v810 = vtanh.pop %v664
        %v811 = vtanh.pop %v669
        %v812 = vtanh.pop %v674
        %v813 = vtanh.pop %v679
        %v814 = vtanh.pop %v684
        %v815 = vtanh.pop %v689
        %v816 = vtanh.pop %v694
        %v817 = vtanh.pop %v699
        %v818 = vtanh.pop %v704
        %v819 = vtanh.pop %v709
        %v820 = vtanh.pop %v714
        %v821 = vtanh.pop %v719
        %v822 = vtanh.pop %v724
        %v823 = vtanh.pop %v729
        %v824 = vtanh.pop %v734
        %v825 = vtanh.pop %v739
        %v826 = vtanh.pop %v744
        %v827 = vtanh.pop %v749
        %v828 = vtanh.pop %v754
        %v829 = vtanh.pop %v759
        %v830 = vtanh.pop %v764
        %v832 = vlaneseq
        %v833 = vshrl.u32 %v832, 7
        %v834 = vsub.s32 0, %v833
        %v835 = vrot.slane %v374, %v834
        %837 = vmatprep.subr.mxu0 0.0
        %838 = vmatpush1.msra.mxu0 %v325
        %839 = vmatprep.subr.mxu0 0.0
        %840 = vmatpush1.msra.mxu0 %v326
        %841 = vmatprep.subr.mxu0 0.0
        %842 = vmatpush1.msra.mxu0 %v327
        %843 = vmatprep.subr.mxu0 0.0
        %844 = vmatpush1.msra.mxu0 %v328
        %845 = vmatprep.subr.mxu0 0.0
        %846 = vmatpush1.msra.mxu0 %v329
        %847 = vmatprep.subr.mxu0 0.0
        %848 = vmatpush1.msra.mxu0 %v330
        %849 = vmatprep.subr.mxu0 0.0
        %850 = vmatpush1.msra.mxu0 %v331
        %851 = vmatprep.subr.mxu0 0.0
        %852 = vmatpush1.msra.mxu0 %v332
        %853 = vmatprep.subr.mxu0 0.0
        %854 = vmatpush1.msra.mxu0 %v333
        %855 = vmatprep.subr.mxu0 0.0
        %856 = vmatpush1.msra.mxu0 %v334
        %857 = vmatprep.subr.mxu0 0.0
        %858 = vmatpush1.msra.mxu0 %v335
        %859 = vmatprep.subr.mxu0 0.0
        %860 = vmatpush1.msra.mxu0 %v336
        %861 = vmatprep.subr.mxu0 0.0
        %862 = vmatpush1.msra.mxu0 %v337
        %863 = vmatprep.subr.mxu0 0.0
        %864 = vmatpush1.msra.mxu0 %v338
        %865 = vmatprep.subr.mxu0 0.0
        %866 = vmatpush1.msra.mxu0 %v339
        %867 = vmatprep.subr.mxu0 0.0
        %868 = vmatpush1.msra.mxu0 %v340
        %869 = vmatprep.subr.mxu0 0.0
        %870 = vmatpush1.msra.mxu0 0.0
        %871 = vmatprep.subr.mxu0 0.0
        %872 = vmatpush1.msra.mxu0 0.0
        %873 = vmatprep.subr.mxu0 0.0
        %874 = vmatpush1.msra.mxu0 0.0
        %875 = vmatprep.subr.mxu0 0.0
        %876 = vmatpush1.msra.mxu0 0.0
        %877 = vmatprep.subr.mxu0 0.0
        %878 = vmatpush1.msra.mxu0 0.0
        %879 = vmatprep.subr.mxu0 0.0
        %880 = vmatpush1.msra.mxu0 0.0
        %881 = vmatprep.subr.mxu0 0.0
        %882 = vmatpush1.msra.mxu0 0.0
        %883 = vmatprep.subr.mxu0 0.0
        %884 = vmatpush1.msra.mxu0 0.0
        %885 = vmatprep.subr.mxu0 0.0
        %886 = vmatpush1.msra.mxu0 0.0
        %887 = vmatprep.subr.mxu0 0.0
        %888 = vmatpush1.msra.mxu0 0.0
        %889 = vmatprep.subr.mxu0 0.0
        %890 = vmatpush1.msra.mxu0 0.0
        %891 = vmatprep.subr.mxu0 0.0
        %892 = vmatpush1.msra.mxu0 0.0
        %893 = vmatprep.subr.mxu0 0.0
        %894 = vmatpush1.msra.mxu0 0.0
        %895 = vmatprep.subr.mxu0 0.0
        %896 = vmatpush1.msra.mxu0 0.0
        %897 = vmatprep.subr.mxu0 0.0
        %898 = vmatpush1.msra.mxu0 0.0
        %899 = vmatprep.subr.mxu0 0.0
        %900 = vmatpush1.msra.mxu0 0.0
        %901 = vmatprep.mubr.f32.mxu0 0.0
        %902 = vmatmul.mubr.f32.gmra.mrb[0].mxu0 %v767
        %v903 = vpop.f32.mrb[0].mxu0
        %v904 = vadd.f32 %v835, %v903
        %v905 = vpop.f32.mrb[0].mxu0
        %906 = vmatprep.mubr.f32.mxu0 0.0
        %907 = vmatmul.mubr.f32.gmra.mrb[0].mxu0 %v768
        %v908 = vpop.f32.mrb[0].mxu0
        %v909 = vadd.f32 %v835, %v908
        %v910 = vpop.f32.mrb[0].mxu0
        %911 = vmatprep.mubr.f32.mxu0 0.0
        %912 = vmatmul.mubr.f32.gmra.mrb[0].mxu0 %v769
        %v913 = vpop.f32.mrb[0].mxu0
        %v914 = vadd.f32 %v835, %v913
        %v915 = vpop.f32.mrb[0].mxu0
        %916 = vmatprep.mubr.f32.mxu0 0.0
        %917 = vmatmul.mubr.f32.gmra.mrb[0].mxu0 %v770
        %v918 = vpop.f32.mrb[0].mxu0
        %v919 = vadd.f32 %v835, %v918
        %v920 = vpop.f32.mrb[0].mxu0
        %921 = vmatprep.mubr.f32.mxu0 0.0
        %922 = vmatmul.mubr.f32.gmra.mrb[0].mxu0 %v771
        %v923 = vpop.f32.mrb[0].mxu0
        %v924 = vadd.f32 %v835, %v923
        %v925 = vpop.f32.mrb[0].mxu0
        %926 = vmatprep.mubr.f32.mxu0 0.0
        %927 = vmatmul.mubr.f32.gmra.mrb[0].mxu0 %v772
        %v928 = vpop.f32.mrb[0].mxu0
        %v929 = vadd.f32 %v835, %v928
        %v930 = vpop.f32.mrb[0].mxu0
        %931 = vmatprep.mubr.f32.mxu0 0.0
        %932 = vmatmul.mubr.f32.gmra.mrb[0].mxu0 %v773
        %v933 = vpop.f32.mrb[0].mxu0
        %v934 = vadd.f32 %v835, %v933
        %v935 = vpop.f32.mrb[0].mxu0
        %936 = vmatprep.mubr.f32.mxu0 0.0
        %937 = vmatmul.mubr.f32.gmra.mrb[0].mxu0 %v774
        %v938 = vpop.f32.mrb[0].mxu0
        %v939 = vadd.f32 %v835, %v938
        %v940 = vpop.f32.mrb[0].mxu0
        %941 = vmatprep.mubr.f32.mxu0 0.0
        %942 = vmatmul.mubr.f32.gmra.mrb[0].mxu0 %v775
        %v943 = vpop.f32.mrb[0].mxu0
        %v944 = vadd.f32 %v835, %v943
        %v945 = vpop.f32.mrb[0].mxu0
        %946 = vmatprep.mubr.f32.mxu0 0.0
        %947 = vmatmul.mubr.f32.gmra.mrb[0].mxu0 %v776
        %v948 = vpop.f32.mrb[0].mxu0
        %v949 = vadd.f32 %v835, %v948
        %v950 = vpop.f32.mrb[0].mxu0
        %951 = vmatprep.mubr.f32.mxu0 0.0
        %952 = vmatmul.mubr.f32.gmra.mrb[0].mxu0 %v777
        %v953 = vpop.f32.mrb[0].mxu0
        %v954 = vadd.f32 %v835, %v953
        %v955 = vpop.f32.mrb[0].mxu0
        %956 = vmatprep.mubr.f32.mxu0 0.0
        %957 = vmatmul.mubr.f32.gmra.mrb[0].mxu0 %v778
        %v958 = vpop.f32.mrb[0].mxu0
        %v959 = vadd.f32 %v835, %v958
        %v960 = vpop.f32.mrb[0].mxu0
        %961 = vmatprep.mubr.f32.mxu0 0.0
        %962 = vmatmul.mubr.f32.gmra.mrb[0].mxu0 %v779
        %v963 = vpop.f32.mrb[0].mxu0
        %v964 = vadd.f32 %v835, %v963
        %v965 = vpop.f32.mrb[0].mxu0
        %966 = vmatprep.mubr.f32.mxu0 0.0
        %967 = vmatmul.mubr.f32.gmra.mrb[0].mxu0 %v780
        %v968 = vpop.f32.mrb[0].mxu0
        %v969 = vadd.f32 %v835, %v968
        %v970 = vpop.f32.mrb[0].mxu0
        %971 = vmatprep.mubr.f32.mxu0 0.0
        %972 = vmatmul.mubr.f32.gmra.mrb[0].mxu0 %v781
        %v973 = vpop.f32.mrb[0].mxu0
        %v974 = vadd.f32 %v835, %v973
        %v975 = vpop.f32.mrb[0].mxu0
        %976 = vmatprep.mubr.f32.mxu0 0.0
        %977 = vmatmul.mubr.f32.gmra.mrb[0].mxu0 %v782
        %v978 = vpop.f32.mrb[0].mxu0
        %v979 = vadd.f32 %v835, %v978
        %v980 = vpop.f32.mrb[0].mxu0
        %981 = vmatprep.mubr.f32.mxu0 0.0
        %982 = vmatmul.mubr.f32.gmra.mrb[0].mxu0 %v783
        %v983 = vpop.f32.mrb[0].mxu0
        %v984 = vadd.f32 %v835, %v983
        %v985 = vpop.f32.mrb[0].mxu0
        %986 = vmatprep.mubr.f32.mxu0 0.0
        %987 = vmatmul.mubr.f32.gmra.mrb[0].mxu0 %v784
        %v988 = vpop.f32.mrb[0].mxu0
        %v989 = vadd.f32 %v835, %v988
        %v990 = vpop.f32.mrb[0].mxu0
        %991 = vmatprep.mubr.f32.mxu0 0.0
        %992 = vmatmul.mubr.f32.gmra.mrb[0].mxu0 %v785
        %v993 = vpop.f32.mrb[0].mxu0
        %v994 = vadd.f32 %v835, %v993
        %v995 = vpop.f32.mrb[0].mxu0
        %996 = vmatprep.mubr.f32.mxu0 0.0
        %997 = vmatmul.mubr.f32.gmra.mrb[0].mxu0 %v786
        %v998 = vpop.f32.mrb[0].mxu0
        %v999 = vadd.f32 %v835, %v998
        %v1000 = vpop.f32.mrb[0].mxu0
        %1001 = vmatprep.mubr.f32.mxu0 0.0
        %1002 = vmatmul.mubr.f32.gmra.mrb[0].mxu0 %v787
        %v1003 = vpop.f32.mrb[0].mxu0
        %v1004 = vadd.f32 %v835, %v1003
        %v1005 = vpop.f32.mrb[0].mxu0
        %1006 = vmatprep.mubr.f32.mxu0 0.0
        %1007 = vmatmul.mubr.f32.gmra.mrb[0].mxu0 %v788
        %v1008 = vpop.f32.mrb[0].mxu0
        %v1009 = vadd.f32 %v835, %v1008
        %v1010 = vpop.f32.mrb[0].mxu0
        %1011 = vmatprep.mubr.f32.mxu0 0.0
        %1012 = vmatmul.mubr.f32.gmra.mrb[0].mxu0 %v789
        %v1013 = vpop.f32.mrb[0].mxu0
        %v1014 = vadd.f32 %v835, %v1013
        %v1015 = vpop.f32.mrb[0].mxu0
        %1016 = vmatprep.mubr.f32.mxu0 0.0
        %1017 = vmatmul.mubr.f32.gmra.mrb[0].mxu0 %v790
        %v1018 = vpop.f32.mrb[0].mxu0
        %v1019 = vadd.f32 %v835, %v1018
        %v1020 = vpop.f32.mrb[0].mxu0
        %1021 = vmatprep.mubr.f32.mxu0 0.0
        %1022 = vmatmul.mubr.f32.gmra.mrb[0].mxu0 %v791
        %v1023 = vpop.f32.mrb[0].mxu0
        %v1024 = vadd.f32 %v835, %v1023
        %v1025 = vpop.f32.mrb[0].mxu0
        %1026 = vmatprep.mubr.f32.mxu0 0.0
        %1027 = vmatmul.mubr.f32.gmra.mrb[0].mxu0 %v792
        %v1028 = vpop.f32.mrb[0].mxu0
        %v1029 = vadd.f32 %v835, %v1028
        %v1030 = vpop.f32.mrb[0].mxu0
        %1031 = vmatprep.mubr.f32.mxu0 0.0
        %1032 = vmatmul.mubr.f32.gmra.mrb[0].mxu0 %v793
        %v1033 = vpop.f32.mrb[0].mxu0
        %v1034 = vadd.f32 %v835, %v1033
        %v1035 = vpop.f32.mrb[0].mxu0
        %1036 = vmatprep.mubr.f32.mxu0 0.0
        %1037 = vmatmul.mubr.f32.gmra.mrb[0].mxu0 %v794
        %v1038 = vpop.f32.mrb[0].mxu0
        %v1039 = vadd.f32 %v835, %v1038
        %v1040 = vpop.f32.mrb[0].mxu0
        %1041 = vmatprep.mubr.f32.mxu0 0.0
        %1042 = vmatmul.mubr.f32.gmra.mrb[0].mxu0 %v795
        %v1043 = vpop.f32.mrb[0].mxu0
        %v1044 = vadd.f32 %v835, %v1043
        %v1045 = vpop.f32.mrb[0].mxu0
        %1046 = vmatprep.mubr.f32.mxu0 0.0
        %1047 = vmatmul.mubr.f32.gmra.mrb[0].mxu0 %v796
        %v1048 = vpop.f32.mrb[0].mxu0
        %v1049 = vadd.f32 %v835, %v1048
        %v1050 = vpop.f32.mrb[0].mxu0
        %1051 = vmatprep.mubr.f32.mxu0 0.0
        %1052 = vmatmul.mubr.f32.gmra.mrb[0].mxu0 %v797
        %v1053 = vpop.f32.mrb[0].mxu0
        %v1054 = vadd.f32 %v835, %v1053
        %v1055 = vpop.f32.mrb[0].mxu0
        %1056 = vmatprep.mubr.f32.mxu0 0.0
        %1057 = vmatmul.mubr.f32.gmra.mrb[0].mxu0 %v798
        %v1058 = vpop.f32.mrb[0].mxu0
        %v1059 = vadd.f32 %v835, %v1058
        %v1060 = vpop.f32.mrb[0].mxu0
        %1061 = vmatprep.mubr.f32.mxu0 0.0
        %1062 = vmatmul.mubr.f32.gmra.mrb[0].mxu0 %v799
        %v1063 = vpop.f32.mrb[0].mxu0
        %v1064 = vadd.f32 %v835, %v1063
        %v1065 = vpop.f32.mrb[0].mxu0
        %1066 = vmatprep.mubr.f32.mxu0 0.0
        %1067 = vmatmul.mubr.f32.gmra.mrb[0].mxu0 %v800
        %v1068 = vpop.f32.mrb[0].mxu0
        %v1069 = vadd.f32 %v835, %v1068
        %v1070 = vpop.f32.mrb[0].mxu0
        %1071 = vmatprep.mubr.f32.mxu0 0.0
        %1072 = vmatmul.mubr.f32.gmra.mrb[0].mxu0 %v801
        %v1073 = vpop.f32.mrb[0].mxu0
        %v1074 = vadd.f32 %v835, %v1073
        %v1075 = vpop.f32.mrb[0].mxu0
        %1076 = vmatprep.mubr.f32.mxu0 0.0
        %1077 = vmatmul.mubr.f32.gmra.mrb[0].mxu0 %v802
        %v1078 = vpop.f32.mrb[0].mxu0
        %v1079 = vadd.f32 %v835, %v1078
        %v1080 = vpop.f32.mrb[0].mxu0
        %1081 = vmatprep.mubr.f32.mxu0 0.0
        %1082 = vmatmul.mubr.f32.gmra.mrb[0].mxu0 %v803
        %v1083 = vpop.f32.mrb[0].mxu0
        %v1084 = vadd.f32 %v835, %v1083
        %v1085 = vpop.f32.mrb[0].mxu0
        %1086 = vmatprep.mubr.f32.mxu0 0.0
        %1087 = vmatmul.mubr.f32.gmra.mrb[0].mxu0 %v804
        %v1088 = vpop.f32.mrb[0].mxu0
        %v1089 = vadd.f32 %v835, %v1088
        %v1090 = vpop.f32.mrb[0].mxu0
        %1091 = vmatprep.mubr.f32.mxu0 0.0
        %1092 = vmatmul.mubr.f32.gmra.mrb[0].mxu0 %v805
        %v1093 = vpop.f32.mrb[0].mxu0
        %v1094 = vadd.f32 %v835, %v1093
        %v1095 = vpop.f32.mrb[0].mxu0
        %1096 = vmatprep.mubr.f32.mxu0 0.0
        %1097 = vmatmul.mubr.f32.gmra.mrb[0].mxu0 %v806
        %v1098 = vpop.f32.mrb[0].mxu0
        %v1099 = vadd.f32 %v835, %v1098
        %v1100 = vpop.f32.mrb[0].mxu0
        %1101 = vmatprep.mubr.f32.mxu0 0.0
        %1102 = vmatmul.mubr.f32.gmra.mrb[0].mxu0 %v807
        %v1103 = vpop.f32.mrb[0].mxu0
        %v1104 = vadd.f32 %v835, %v1103
        %v1105 = vpop.f32.mrb[0].mxu0
        %1106 = vmatprep.mubr.f32.mxu0 0.0
        %1107 = vmatmul.mubr.f32.gmra.mrb[0].mxu0 %v808
        %v1108 = vpop.f32.mrb[0].mxu0
        %v1109 = vadd.f32 %v835, %v1108
        %v1110 = vpop.f32.mrb[0].mxu0
        %1111 = vmatprep.mubr.f32.mxu0 0.0
        %1112 = vmatmul.mubr.f32.gmra.mrb[0].mxu0 %v809
        %v1113 = vpop.f32.mrb[0].mxu0
        %v1114 = vadd.f32 %v835, %v1113
        %v1115 = vpop.f32.mrb[0].mxu0
        %1116 = vmatprep.mubr.f32.mxu0 0.0
        %1117 = vmatmul.mubr.f32.gmra.mrb[0].mxu0 %v810
        %v1118 = vpop.f32.mrb[0].mxu0
        %v1119 = vadd.f32 %v835, %v1118
        %v1120 = vpop.f32.mrb[0].mxu0
        %1121 = vmatprep.mubr.f32.mxu0 0.0
        %1122 = vmatmul.mubr.f32.gmra.mrb[0].mxu0 %v811
        %v1123 = vpop.f32.mrb[0].mxu0
        %v1124 = vadd.f32 %v835, %v1123
        %v1125 = vpop.f32.mrb[0].mxu0
        %1126 = vmatprep.mubr.f32.mxu0 0.0
        %1127 = vmatmul.mubr.f32.gmra.mrb[0].mxu0 %v812
        %v1128 = vpop.f32.mrb[0].mxu0
        %v1129 = vadd.f32 %v835, %v1128
        %v1130 = vpop.f32.mrb[0].mxu0
        %1131 = vmatprep.mubr.f32.mxu0 0.0
        %1132 = vmatmul.mubr.f32.gmra.mrb[0].mxu0 %v813
        %v1133 = vpop.f32.mrb[0].mxu0
        %v1134 = vadd.f32 %v835, %v1133
        %v1135 = vpop.f32.mrb[0].mxu0
        %1136 = vmatprep.mubr.f32.mxu0 0.0
        %1137 = vmatmul.mubr.f32.gmra.mrb[0].mxu0 %v814
        %v1138 = vpop.f32.mrb[0].mxu0
        %v1139 = vadd.f32 %v835, %v1138
        %v1140 = vpop.f32.mrb[0].mxu0
        %1141 = vmatprep.mubr.f32.mxu0 0.0
        %1142 = vmatmul.mubr.f32.gmra.mrb[0].mxu0 %v815
        %v1143 = vpop.f32.mrb[0].mxu0
        %v1144 = vadd.f32 %v835, %v1143
        %v1145 = vpop.f32.mrb[0].mxu0
        %1146 = vmatprep.mubr.f32.mxu0 0.0
        %1147 = vmatmul.mubr.f32.gmra.mrb[0].mxu0 %v816
        %v1148 = vpop.f32.mrb[0].mxu0
        %v1149 = vadd.f32 %v835, %v1148
        %v1150 = vpop.f32.mrb[0].mxu0
        %1151 = vmatprep.mubr.f32.mxu0 0.0
        %1152 = vmatmul.mubr.f32.gmra.mrb[0].mxu0 %v817
        %v1153 = vpop.f32.mrb[0].mxu0
        %v1154 = vadd.f32 %v835, %v1153
        %v1155 = vpop.f32.mrb[0].mxu0
        %1156 = vmatprep.mubr.f32.mxu0 0.0
        %1157 = vmatmul.mubr.f32.gmra.mrb[0].mxu0 %v818
        %v1158 = vpop.f32.mrb[0].mxu0
        %v1159 = vadd.f32 %v835, %v1158
        %v1160 = vpop.f32.mrb[0].mxu0
        %1161 = vmatprep.mubr.f32.mxu0 0.0
        %1162 = vmatmul.mubr.f32.gmra.mrb[0].mxu0 %v819
        %v1163 = vpop.f32.mrb[0].mxu0
        %v1164 = vadd.f32 %v835, %v1163
        %v1165 = vpop.f32.mrb[0].mxu0
        %1166 = vmatprep.mubr.f32.mxu0 0.0
        %1167 = vmatmul.mubr.f32.gmra.mrb[0].mxu0 %v820
        %v1168 = vpop.f32.mrb[0].mxu0
        %v1169 = vadd.f32 %v835, %v1168
        %v1170 = vpop.f32.mrb[0].mxu0
        %1171 = vmatprep.mubr.f32.mxu0 0.0
        %1172 = vmatmul.mubr.f32.gmra.mrb[0].mxu0 %v821
        %v1173 = vpop.f32.mrb[0].mxu0
        %v1174 = vadd.f32 %v835, %v1173
        %v1175 = vpop.f32.mrb[0].mxu0
        %1176 = vmatprep.mubr.f32.mxu0 0.0
        %1177 = vmatmul.mubr.f32.gmra.mrb[0].mxu0 %v822
        %v1178 = vpop.f32.mrb[0].mxu0
        %v1179 = vadd.f32 %v835, %v1178
        %v1180 = vpop.f32.mrb[0].mxu0
        %1181 = vmatprep.mubr.f32.mxu0 0.0
        %1182 = vmatmul.mubr.f32.gmra.mrb[0].mxu0 %v823
        %v1183 = vpop.f32.mrb[0].mxu0
        %v1184 = vadd.f32 %v835, %v1183
        %v1185 = vpop.f32.mrb[0].mxu0
        %1186 = vmatprep.mubr.f32.mxu0 0.0
        %1187 = vmatmul.mubr.f32.gmra.mrb[0].mxu0 %v824
        %v1188 = vpop.f32.mrb[0].mxu0
        %v1189 = vadd.f32 %v835, %v1188
        %v1190 = vpop.f32.mrb[0].mxu0
        %1191 = vmatprep.mubr.f32.mxu0 0.0
        %1192 = vmatmul.mubr.f32.gmra.mrb[0].mxu0 %v825
        %v1193 = vpop.f32.mrb[0].mxu0
        %v1194 = vadd.f32 %v835, %v1193
        %v1195 = vpop.f32.mrb[0].mxu0
        %1196 = vmatprep.mubr.f32.mxu0 0.0
        %1197 = vmatmul.mubr.f32.gmra.mrb[0].mxu0 %v826
        %v1198 = vpop.f32.mrb[0].mxu0
        %v1199 = vadd.f32 %v835, %v1198
        %v1200 = vpop.f32.mrb[0].mxu0
        %1201 = vmatprep.mubr.f32.mxu0 0.0
        %1202 = vmatmul.mubr.f32.gmra.mrb[0].mxu0 %v827
        %v1203 = vpop.f32.mrb[0].mxu0
        %v1204 = vadd.f32 %v835, %v1203
        %v1205 = vpop.f32.mrb[0].mxu0
        %1206 = vmatprep.mubr.f32.mxu0 0.0
        %1207 = vmatmul.mubr.f32.gmra.mrb[0].mxu0 %v828
        %v1208 = vpop.f32.mrb[0].mxu0
        %v1209 = vadd.f32 %v835, %v1208
        %v1210 = vpop.f32.mrb[0].mxu0
        %1211 = vmatprep.mubr.f32.mxu0 0.0
        %1212 = vmatmul.mubr.f32.gmra.mrb[0].mxu0 %v829
        %v1213 = vpop.f32.mrb[0].mxu0
        %v1214 = vadd.f32 %v835, %v1213
        %v1215 = vpop.f32.mrb[0].mxu0
        %1216 = vmatprep.mubr.f32.mxu0 0.0
        %1217 = vmatmul.mubr.f32.gmra.mrb[0].mxu0 %v830
        %v1218 = vpop.f32.mrb[0].mxu0
        %v1219 = vadd.f32 %v835, %v1218
        %v1220 = vpop.f32.mrb[0].mxu0
        %1221 = vdwg.mxu0
        %v1222 = vtanh.pop %v904
        %v1223 = vtanh.pop %v909
        %v1224 = vtanh.pop %v914
        %v1225 = vtanh.pop %v919
        %v1226 = vtanh.pop %v924
        %v1227 = vtanh.pop %v929
        %v1228 = vtanh.pop %v934
        %v1229 = vtanh.pop %v939
        %v1230 = vtanh.pop %v944
        %v1231 = vtanh.pop %v949
        %v1232 = vtanh.pop %v954
        %v1233 = vtanh.pop %v959
        %v1234 = vtanh.pop %v964
        %v1235 = vtanh.pop %v969
        %v1236 = vtanh.pop %v974
        %v1237 = vtanh.pop %v979
        %v1238 = vtanh.pop %v984
        %v1239 = vtanh.pop %v989
        %v1240 = vtanh.pop %v994
        %v1241 = vtanh.pop %v999
        %v1242 = vtanh.pop %v1004
        %v1243 = vtanh.pop %v1009
        %v1244 = vtanh.pop %v1014
        %v1245 = vtanh.pop %v1019
        %v1246 = vtanh.pop %v1024
        %v1247 = vtanh.pop %v1029
        %v1248 = vtanh.pop %v1034
        %v1249 = vtanh.pop %v1039
        %v1250 = vtanh.pop %v1044
        %v1251 = vtanh.pop %v1049
        %v1252 = vtanh.pop %v1054
        %v1253 = vtanh.pop %v1059
        %v1254 = vtanh.pop %v1064
        %v1255 = vtanh.pop %v1069
        %v1256 = vtanh.pop %v1074
        %v1257 = vtanh.pop %v1079
        %v1258 = vtanh.pop %v1084
        %v1259 = vtanh.pop %v1089
        %v1260 = vtanh.pop %v1094
        %v1261 = vtanh.pop %v1099
        %v1262 = vtanh.pop %v1104
        %v1263 = vtanh.pop %v1109
        %v1264 = vtanh.pop %v1114
        %v1265 = vtanh.pop %v1119
        %v1266 = vtanh.pop %v1124
        %v1267 = vtanh.pop %v1129
        %v1268 = vtanh.pop %v1134
        %v1269 = vtanh.pop %v1139
        %v1270 = vtanh.pop %v1144
        %v1271 = vtanh.pop %v1149
        %v1272 = vtanh.pop %v1154
        %v1273 = vtanh.pop %v1159
        %v1274 = vtanh.pop %v1164
        %v1275 = vtanh.pop %v1169
        %v1276 = vtanh.pop %v1174
        %v1277 = vtanh.pop %v1179
        %v1278 = vtanh.pop %v1184
        %v1279 = vtanh.pop %v1189
        %v1280 = vtanh.pop %v1194
        %v1281 = vtanh.pop %v1199
        %v1282 = vtanh.pop %v1204
        %v1283 = vtanh.pop %v1209
        %v1284 = vtanh.pop %v1214
        %v1285 = vtanh.pop %v1219
        %v1287 = vlaneseq
        %v1288 = vshrl.u32 %v1287, 7
        %v1289 = vsub.s32 0, %v1288
        %v1290 = vrot.slane %v375, %v1289
        %v1291 = vlaneseq
        %v1292 = vshrl.u32 %v1291, 7
        %v1293 = vsub.s32 1, %v1292
        %v1294 = vrot.slane %v375, %v1293
        %1297 = vmatprep.subr.mxu0 %v342
        %1298 = vmatpush1.msra.mxu0 %v341
        %1299 = vmatprep.subr.mxu0 %v344
        %1300 = vmatpush1.msra.mxu0 %v343
        %1301 = vmatprep.subr.mxu0 %v346
        %1302 = vmatpush1.msra.mxu0 %v345
        %1303 = vmatprep.subr.mxu0 %v348
        %1304 = vmatpush1.msra.mxu0 %v347
        %1305 = vmatprep.subr.mxu0 %v350
        %1306 = vmatpush1.msra.mxu0 %v349
        %1307 = vmatprep.subr.mxu0 %v352
        %1308 = vmatpush1.msra.mxu0 %v351
        %1309 = vmatprep.subr.mxu0 %v354
        %1310 = vmatpush1.msra.mxu0 %v353
        %1311 = vmatprep.subr.mxu0 %v356
        %1312 = vmatpush1.msra.mxu0 %v355
        %1313 = vmatprep.subr.mxu0 %v358
        %1314 = vmatpush1.msra.mxu0 %v357
        %1315 = vmatprep.subr.mxu0 %v360
        %1316 = vmatpush1.msra.mxu0 %v359
        %1317 = vmatprep.subr.mxu0 %v362
        %1318 = vmatpush1.msra.mxu0 %v361
        %1319 = vmatprep.subr.mxu0 %v364
        %1320 = vmatpush1.msra.mxu0 %v363
        %1321 = vmatprep.subr.mxu0 %v366
        %1322 = vmatpush1.msra.mxu0 %v365
        %1323 = vmatprep.subr.mxu0 %v368
        %1324 = vmatpush1.msra.mxu0 %v367
        %1325 = vmatprep.subr.mxu0 %v370
        %1326 = vmatpush1.msra.mxu0 %v369
        %1327 = vmatprep.subr.mxu0 %v372
        %1328 = vmatpush1.msra.mxu0 %v371
        %1329 = vmatprep.subr.mxu0 0.0
        %1330 = vmatpush1.msra.mxu0 0.0
        %1331 = vmatprep.subr.mxu0 0.0
        %1332 = vmatpush1.msra.mxu0 0.0
        %1333 = vmatprep.subr.mxu0 0.0
        %1334 = vmatpush1.msra.mxu0 0.0
        %1335 = vmatprep.subr.mxu0 0.0
        %1336 = vmatpush1.msra.mxu0 0.0
        %1337 = vmatprep.subr.mxu0 0.0
        %1338 = vmatpush1.msra.mxu0 0.0
        %1339 = vmatprep.subr.mxu0 0.0
        %1340 = vmatpush1.msra.mxu0 0.0
        %1341 = vmatprep.subr.mxu0 0.0
        %1342 = vmatpush1.msra.mxu0 0.0
        %1343 = vmatprep.subr.mxu0 0.0
        %1344 = vmatpush1.msra.mxu0 0.0
        %1345 = vmatprep.subr.mxu0 0.0
        %1346 = vmatpush1.msra.mxu0 0.0
        %1347 = vmatprep.subr.mxu0 0.0
        %1348 = vmatpush1.msra.mxu0 0.0
        %1349 = vmatprep.subr.mxu0 0.0
        %1350 = vmatpush1.msra.mxu0 0.0
        %1351 = vmatprep.subr.mxu0 0.0
        %1352 = vmatpush1.msra.mxu0 0.0
        %1353 = vmatprep.subr.mxu0 0.0
        %1354 = vmatpush1.msra.mxu0 0.0
        %1355 = vmatprep.subr.mxu0 0.0
        %1356 = vmatpush1.msra.mxu0 0.0
        %1357 = vmatprep.subr.mxu0 0.0
        %1358 = vmatpush1.msra.mxu0 0.0
        %1359 = vmatprep.subr.mxu0 0.0
        %1360 = vmatpush1.msra.mxu0 0.0
        %1361 = vmatprep.mubr.f32.mxu0 0.0
        %1362 = vmatmul.mubr.f32.gmra.mrb[0].mxu0 %v1222
        %v1363 = vpop.f32.mrb[0].mxu0
        %v1364 = vadd.f32 %v1290, %v1363
        %v1365 = vpop.f32.mrb[0].mxu0
        %v1366 = vadd.f32 %v1294, %v1365
        %1367 = vmatprep.mubr.f32.mxu0 0.0
        %1368 = vmatmul.mubr.f32.gmra.mrb[0].mxu0 %v1223
        %v1369 = vpop.f32.mrb[0].mxu0
        %v1370 = vadd.f32 %v1290, %v1369
        %v1371 = vpop.f32.mrb[0].mxu0
        %v1372 = vadd.f32 %v1294, %v1371
        %1373 = vmatprep.mubr.f32.mxu0 0.0
        %1374 = vmatmul.mubr.f32.gmra.mrb[0].mxu0 %v1224
        %v1375 = vpop.f32.mrb[0].mxu0
        %v1376 = vadd.f32 %v1290, %v1375
        %v1377 = vpop.f32.mrb[0].mxu0
        %v1378 = vadd.f32 %v1294, %v1377
        %1379 = vmatprep.mubr.f32.mxu0 0.0
        %1380 = vmatmul.mubr.f32.gmra.mrb[0].mxu0 %v1225
        %v1381 = vpop.f32.mrb[0].mxu0
        %v1382 = vadd.f32 %v1290, %v1381
        %v1383 = vpop.f32.mrb[0].mxu0
        %v1384 = vadd.f32 %v1294, %v1383
        %1385 = vmatprep.mubr.f32.mxu0 0.0
        %1386 = vmatmul.mubr.f32.gmra.mrb[0].mxu0 %v1226
        %v1387 = vpop.f32.mrb[0].mxu0
        %v1388 = vadd.f32 %v1290, %v1387
        %v1389 = vpop.f32.mrb[0].mxu0
        %v1390 = vadd.f32 %v1294, %v1389
        %1391 = vmatprep.mubr.f32.mxu0 0.0
        %1392 = vmatmul.mubr.f32.gmra.mrb[0].mxu0 %v1227
        %v1393 = vpop.f32.mrb[0].mxu0
        %v1394 = vadd.f32 %v1290, %v1393
        %v1395 = vpop.f32.mrb[0].mxu0
        %v1396 = vadd.f32 %v1294, %v1395
        %1397 = vmatprep.mubr.f32.mxu0 0.0
        %1398 = vmatmul.mubr.f32.gmra.mrb[0].mxu0 %v1228
        %v1399 = vpop.f32.mrb[0].mxu0
        %v1400 = vadd.f32 %v1290, %v1399
        %v1401 = vpop.f32.mrb[0].mxu0
        %v1402 = vadd.f32 %v1294, %v1401
        %1403 = vmatprep.mubr.f32.mxu0 0.0
        %1404 = vmatmul.mubr.f32.gmra.mrb[0].mxu0 %v1229
        %v1405 = vpop.f32.mrb[0].mxu0
        %v1406 = vadd.f32 %v1290, %v1405
        %v1407 = vpop.f32.mrb[0].mxu0
        %v1408 = vadd.f32 %v1294, %v1407
        %1409 = vmatprep.mubr.f32.mxu0 0.0
        %1410 = vmatmul.mubr.f32.gmra.mrb[0].mxu0 %v1230
        %v1411 = vpop.f32.mrb[0].mxu0
        %v1412 = vadd.f32 %v1290, %v1411
        %v1413 = vpop.f32.mrb[0].mxu0
        %v1414 = vadd.f32 %v1294, %v1413
        %1415 = vmatprep.mubr.f32.mxu0 0.0
        %1416 = vmatmul.mubr.f32.gmra.mrb[0].mxu0 %v1231
        %v1417 = vpop.f32.mrb[0].mxu0
        %v1418 = vadd.f32 %v1290, %v1417
        %v1419 = vpop.f32.mrb[0].mxu0
        %v1420 = vadd.f32 %v1294, %v1419
        %1421 = vmatprep.mubr.f32.mxu0 0.0
        %1422 = vmatmul.mubr.f32.gmra.mrb[0].mxu0 %v1232
        %v1423 = vpop.f32.mrb[0].mxu0
        %v1424 = vadd.f32 %v1290, %v1423
        %v1425 = vpop.f32.mrb[0].mxu0
        %v1426 = vadd.f32 %v1294, %v1425
        %1427 = vmatprep.mubr.f32.mxu0 0.0
        %1428 = vmatmul.mubr.f32.gmra.mrb[0].mxu0 %v1233
        %v1429 = vpop.f32.mrb[0].mxu0
        %v1430 = vadd.f32 %v1290, %v1429
        %v1431 = vpop.f32.mrb[0].mxu0
        %v1432 = vadd.f32 %v1294, %v1431
        %1433 = vmatprep.mubr.f32.mxu0 0.0
        %1434 = vmatmul.mubr.f32.gmra.mrb[0].mxu0 %v1234
        %v1435 = vpop.f32.mrb[0].mxu0
        %v1436 = vadd.f32 %v1290, %v1435
        %v1437 = vpop.f32.mrb[0].mxu0
        %v1438 = vadd.f32 %v1294, %v1437
        %1439 = vmatprep.mubr.f32.mxu0 0.0
        %1440 = vmatmul.mubr.f32.gmra.mrb[0].mxu0 %v1235
        %v1441 = vpop.f32.mrb[0].mxu0
        %v1442 = vadd.f32 %v1290, %v1441
        %v1443 = vpop.f32.mrb[0].mxu0
        %v1444 = vadd.f32 %v1294, %v1443
        %1445 = vmatprep.mubr.f32.mxu0 0.0
        %1446 = vmatmul.mubr.f32.gmra.mrb[0].mxu0 %v1236
        %v1447 = vpop.f32.mrb[0].mxu0
        %v1448 = vadd.f32 %v1290, %v1447
        %v1449 = vpop.f32.mrb[0].mxu0
        %v1450 = vadd.f32 %v1294, %v1449
        %1451 = vmatprep.mubr.f32.mxu0 0.0
        %1452 = vmatmul.mubr.f32.gmra.mrb[0].mxu0 %v1237
        %v1453 = vpop.f32.mrb[0].mxu0
        %v1454 = vadd.f32 %v1290, %v1453
        %v1455 = vpop.f32.mrb[0].mxu0
        %v1456 = vadd.f32 %v1294, %v1455
        %1457 = vmatprep.mubr.f32.mxu0 0.0
        %1458 = vmatmul.mubr.f32.gmra.mrb[0].mxu0 %v1238
        %v1459 = vpop.f32.mrb[0].mxu0
        %v1460 = vadd.f32 %v1290, %v1459
        %v1461 = vpop.f32.mrb[0].mxu0
        %v1462 = vadd.f32 %v1294, %v1461
        %1463 = vmatprep.mubr.f32.mxu0 0.0
        %1464 = vmatmul.mubr.f32.gmra.mrb[0].mxu0 %v1239
        %v1465 = vpop.f32.mrb[0].mxu0
        %v1466 = vadd.f32 %v1290, %v1465
        %v1467 = vpop.f32.mrb[0].mxu0
        %v1468 = vadd.f32 %v1294, %v1467
        %1469 = vmatprep.mubr.f32.mxu0 0.0
        %1470 = vmatmul.mubr.f32.gmra.mrb[0].mxu0 %v1240
        %v1471 = vpop.f32.mrb[0].mxu0
        %v1472 = vadd.f32 %v1290, %v1471
        %v1473 = vpop.f32.mrb[0].mxu0
        %v1474 = vadd.f32 %v1294, %v1473
        %1475 = vmatprep.mubr.f32.mxu0 0.0
        %1476 = vmatmul.mubr.f32.gmra.mrb[0].mxu0 %v1241
        %v1477 = vpop.f32.mrb[0].mxu0
        %v1478 = vadd.f32 %v1290, %v1477
        %v1479 = vpop.f32.mrb[0].mxu0
        %v1480 = vadd.f32 %v1294, %v1479
        %1481 = vmatprep.mubr.f32.mxu0 0.0
        %1482 = vmatmul.mubr.f32.gmra.mrb[0].mxu0 %v1242
        %v1483 = vpop.f32.mrb[0].mxu0
        %v1484 = vadd.f32 %v1290, %v1483
        %v1485 = vpop.f32.mrb[0].mxu0
        %v1486 = vadd.f32 %v1294, %v1485
        %1487 = vmatprep.mubr.f32.mxu0 0.0
        %1488 = vmatmul.mubr.f32.gmra.mrb[0].mxu0 %v1243
        %v1489 = vpop.f32.mrb[0].mxu0
        %v1490 = vadd.f32 %v1290, %v1489
        %v1491 = vpop.f32.mrb[0].mxu0
        %v1492 = vadd.f32 %v1294, %v1491
        %1493 = vmatprep.mubr.f32.mxu0 0.0
        %1494 = vmatmul.mubr.f32.gmra.mrb[0].mxu0 %v1244
        %v1495 = vpop.f32.mrb[0].mxu0
        %v1496 = vadd.f32 %v1290, %v1495
        %v1497 = vpop.f32.mrb[0].mxu0
        %v1498 = vadd.f32 %v1294, %v1497
        %1499 = vmatprep.mubr.f32.mxu0 0.0
        %1500 = vmatmul.mubr.f32.gmra.mrb[0].mxu0 %v1245
        %v1501 = vpop.f32.mrb[0].mxu0
        %v1502 = vadd.f32 %v1290, %v1501
        %v1503 = vpop.f32.mrb[0].mxu0
        %v1504 = vadd.f32 %v1294, %v1503
        %1505 = vmatprep.mubr.f32.mxu0 0.0
        %1506 = vmatmul.mubr.f32.gmra.mrb[0].mxu0 %v1246
        %v1507 = vpop.f32.mrb[0].mxu0
        %v1508 = vadd.f32 %v1290, %v1507
        %v1509 = vpop.f32.mrb[0].mxu0
        %v1510 = vadd.f32 %v1294, %v1509
        %1511 = vmatprep.mubr.f32.mxu0 0.0
        %1512 = vmatmul.mubr.f32.gmra.mrb[0].mxu0 %v1247
        %v1513 = vpop.f32.mrb[0].mxu0
        %v1514 = vadd.f32 %v1290, %v1513
        %v1515 = vpop.f32.mrb[0].mxu0
        %v1516 = vadd.f32 %v1294, %v1515
        %1517 = vmatprep.mubr.f32.mxu0 0.0
        %1518 = vmatmul.mubr.f32.gmra.mrb[0].mxu0 %v1248
        %v1519 = vpop.f32.mrb[0].mxu0
        %v1520 = vadd.f32 %v1290, %v1519
        %v1521 = vpop.f32.mrb[0].mxu0
        %v1522 = vadd.f32 %v1294, %v1521
        %1523 = vmatprep.mubr.f32.mxu0 0.0
        %1524 = vmatmul.mubr.f32.gmra.mrb[0].mxu0 %v1249
        %v1525 = vpop.f32.mrb[0].mxu0
        %v1526 = vadd.f32 %v1290, %v1525
        %v1527 = vpop.f32.mrb[0].mxu0
        %v1528 = vadd.f32 %v1294, %v1527
        %1529 = vmatprep.mubr.f32.mxu0 0.0
        %1530 = vmatmul.mubr.f32.gmra.mrb[0].mxu0 %v1250
        %v1531 = vpop.f32.mrb[0].mxu0
        %v1532 = vadd.f32 %v1290, %v1531
        %v1533 = vpop.f32.mrb[0].mxu0
        %v1534 = vadd.f32 %v1294, %v1533
        %1535 = vmatprep.mubr.f32.mxu0 0.0
        %1536 = vmatmul.mubr.f32.gmra.mrb[0].mxu0 %v1251
        %v1537 = vpop.f32.mrb[0].mxu0
        %v1538 = vadd.f32 %v1290, %v1537
        %v1539 = vpop.f32.mrb[0].mxu0
        %v1540 = vadd.f32 %v1294, %v1539
        %1541 = vmatprep.mubr.f32.mxu0 0.0
        %1542 = vmatmul.mubr.f32.gmra.mrb[0].mxu0 %v1252
        %v1543 = vpop.f32.mrb[0].mxu0
        %v1544 = vadd.f32 %v1290, %v1543
        %v1545 = vpop.f32.mrb[0].mxu0
        %v1546 = vadd.f32 %v1294, %v1545
        %1547 = vmatprep.mubr.f32.mxu0 0.0
        %1548 = vmatmul.mubr.f32.gmra.mrb[0].mxu0 %v1253
        %v1549 = vpop.f32.mrb[0].mxu0
        %v1550 = vadd.f32 %v1290, %v1549
        %v1551 = vpop.f32.mrb[0].mxu0
        %v1552 = vadd.f32 %v1294, %v1551
        %1553 = vmatprep.mubr.f32.mxu0 0.0
        %1554 = vmatmul.mubr.f32.gmra.mrb[0].mxu0 %v1254
        %v1555 = vpop.f32.mrb[0].mxu0
        %v1556 = vadd.f32 %v1290, %v1555
        %v1557 = vpop.f32.mrb[0].mxu0
        %v1558 = vadd.f32 %v1294, %v1557
        %1559 = vmatprep.mubr.f32.mxu0 0.0
        %1560 = vmatmul.mubr.f32.gmra.mrb[0].mxu0 %v1255
        %v1561 = vpop.f32.mrb[0].mxu0
        %v1562 = vadd.f32 %v1290, %v1561
        %v1563 = vpop.f32.mrb[0].mxu0
        %v1564 = vadd.f32 %v1294, %v1563
        %1565 = vmatprep.mubr.f32.mxu0 0.0
        %1566 = vmatmul.mubr.f32.gmra.mrb[0].mxu0 %v1256
        %v1567 = vpop.f32.mrb[0].mxu0
        %v1568 = vadd.f32 %v1290, %v1567
        %v1569 = vpop.f32.mrb[0].mxu0
        %v1570 = vadd.f32 %v1294, %v1569
        %1571 = vmatprep.mubr.f32.mxu0 0.0
        %1572 = vmatmul.mubr.f32.gmra.mrb[0].mxu0 %v1257
        %v1573 = vpop.f32.mrb[0].mxu0
        %v1574 = vadd.f32 %v1290, %v1573
        %v1575 = vpop.f32.mrb[0].mxu0
        %v1576 = vadd.f32 %v1294, %v1575
        %1577 = vmatprep.mubr.f32.mxu0 0.0
        %1578 = vmatmul.mubr.f32.gmra.mrb[0].mxu0 %v1258
        %v1579 = vpop.f32.mrb[0].mxu0
        %v1580 = vadd.f32 %v1290, %v1579
        %v1581 = vpop.f32.mrb[0].mxu0
        %v1582 = vadd.f32 %v1294, %v1581
        %1583 = vmatprep.mubr.f32.mxu0 0.0
        %1584 = vmatmul.mubr.f32.gmra.mrb[0].mxu0 %v1259
        %v1585 = vpop.f32.mrb[0].mxu0
        %v1586 = vadd.f32 %v1290, %v1585
        %v1587 = vpop.f32.mrb[0].mxu0
        %v1588 = vadd.f32 %v1294, %v1587
        %1589 = vmatprep.mubr.f32.mxu0 0.0
        %1590 = vmatmul.mubr.f32.gmra.mrb[0].mxu0 %v1260
        %v1591 = vpop.f32.mrb[0].mxu0
        %v1592 = vadd.f32 %v1290, %v1591
        %v1593 = vpop.f32.mrb[0].mxu0
        %v1594 = vadd.f32 %v1294, %v1593
        %1595 = vmatprep.mubr.f32.mxu0 0.0
        %1596 = vmatmul.mubr.f32.gmra.mrb[0].mxu0 %v1261
        %v1597 = vpop.f32.mrb[0].mxu0
        %v1598 = vadd.f32 %v1290, %v1597
        %v1599 = vpop.f32.mrb[0].mxu0
        %v1600 = vadd.f32 %v1294, %v1599
        %1601 = vmatprep.mubr.f32.mxu0 0.0
        %1602 = vmatmul.mubr.f32.gmra.mrb[0].mxu0 %v1262
        %v1603 = vpop.f32.mrb[0].mxu0
        %v1604 = vadd.f32 %v1290, %v1603
        %v1605 = vpop.f32.mrb[0].mxu0
        %v1606 = vadd.f32 %v1294, %v1605
        %1607 = vmatprep.mubr.f32.mxu0 0.0
        %1608 = vmatmul.mubr.f32.gmra.mrb[0].mxu0 %v1263
        %v1609 = vpop.f32.mrb[0].mxu0
        %v1610 = vadd.f32 %v1290, %v1609
        %v1611 = vpop.f32.mrb[0].mxu0
        %v1612 = vadd.f32 %v1294, %v1611
        %1613 = vmatprep.mubr.f32.mxu0 0.0
        %1614 = vmatmul.mubr.f32.gmra.mrb[0].mxu0 %v1264
        %v1615 = vpop.f32.mrb[0].mxu0
        %v1616 = vadd.f32 %v1290, %v1615
        %v1617 = vpop.f32.mrb[0].mxu0
        %v1618 = vadd.f32 %v1294, %v1617
        %1619 = vmatprep.mubr.f32.mxu0 0.0
        %1620 = vmatmul.mubr.f32.gmra.mrb[0].mxu0 %v1265
        %v1621 = vpop.f32.mrb[0].mxu0
        %v1622 = vadd.f32 %v1290, %v1621
        %v1623 = vpop.f32.mrb[0].mxu0
        %v1624 = vadd.f32 %v1294, %v1623
        %1625 = vmatprep.mubr.f32.mxu0 0.0
        %1626 = vmatmul.mubr.f32.gmra.mrb[0].mxu0 %v1266
        %v1627 = vpop.f32.mrb[0].mxu0
        %v1628 = vadd.f32 %v1290, %v1627
        %v1629 = vpop.f32.mrb[0].mxu0
        %v1630 = vadd.f32 %v1294, %v1629
        %1631 = vmatprep.mubr.f32.mxu0 0.0
        %1632 = vmatmul.mubr.f32.gmra.mrb[0].mxu0 %v1267
        %v1633 = vpop.f32.mrb[0].mxu0
        %v1634 = vadd.f32 %v1290, %v1633
        %v1635 = vpop.f32.mrb[0].mxu0
        %v1636 = vadd.f32 %v1294, %v1635
        %1637 = vmatprep.mubr.f32.mxu0 0.0
        %1638 = vmatmul.mubr.f32.gmra.mrb[0].mxu0 %v1268
        %v1639 = vpop.f32.mrb[0].mxu0
        %v1640 = vadd.f32 %v1290, %v1639
        %v1641 = vpop.f32.mrb[0].mxu0
        %v1642 = vadd.f32 %v1294, %v1641
        %1643 = vmatprep.mubr.f32.mxu0 0.0
        %1644 = vmatmul.mubr.f32.gmra.mrb[0].mxu0 %v1269
        %v1645 = vpop.f32.mrb[0].mxu0
        %v1646 = vadd.f32 %v1290, %v1645
        %v1647 = vpop.f32.mrb[0].mxu0
        %v1648 = vadd.f32 %v1294, %v1647
        %1649 = vmatprep.mubr.f32.mxu0 0.0
        %1650 = vmatmul.mubr.f32.gmra.mrb[0].mxu0 %v1270
        %v1651 = vpop.f32.mrb[0].mxu0
        %v1652 = vadd.f32 %v1290, %v1651
        %v1653 = vpop.f32.mrb[0].mxu0
        %v1654 = vadd.f32 %v1294, %v1653
        %1655 = vmatprep.mubr.f32.mxu0 0.0
        %1656 = vmatmul.mubr.f32.gmra.mrb[0].mxu0 %v1271
        %v1657 = vpop.f32.mrb[0].mxu0
        %v1658 = vadd.f32 %v1290, %v1657
        %v1659 = vpop.f32.mrb[0].mxu0
        %v1660 = vadd.f32 %v1294, %v1659
        %1661 = vmatprep.mubr.f32.mxu0 0.0
        %1662 = vmatmul.mubr.f32.gmra.mrb[0].mxu0 %v1272
        %v1663 = vpop.f32.mrb[0].mxu0
        %v1664 = vadd.f32 %v1290, %v1663
        %v1665 = vpop.f32.mrb[0].mxu0
        %v1666 = vadd.f32 %v1294, %v1665
        %1667 = vmatprep.mubr.f32.mxu0 0.0
        %1668 = vmatmul.mubr.f32.gmra.mrb[0].mxu0 %v1273
        %v1669 = vpop.f32.mrb[0].mxu0
        %v1670 = vadd.f32 %v1290, %v1669
        %v1671 = vpop.f32.mrb[0].mxu0
        %v1672 = vadd.f32 %v1294, %v1671
        %1673 = vmatprep.mubr.f32.mxu0 0.0
        %1674 = vmatmul.mubr.f32.gmra.mrb[0].mxu0 %v1274
        %v1675 = vpop.f32.mrb[0].mxu0
        %v1676 = vadd.f32 %v1290, %v1675
        %v1677 = vpop.f32.mrb[0].mxu0
        %v1678 = vadd.f32 %v1294, %v1677
        %1679 = vmatprep.mubr.f32.mxu0 0.0
        %1680 = vmatmul.mubr.f32.gmra.mrb[0].mxu0 %v1275
        %v1681 = vpop.f32.mrb[0].mxu0
        %v1682 = vadd.f32 %v1290, %v1681
        %v1683 = vpop.f32.mrb[0].mxu0
        %v1684 = vadd.f32 %v1294, %v1683
        %1685 = vmatprep.mubr.f32.mxu0 0.0
        %1686 = vmatmul.mubr.f32.gmra.mrb[0].mxu0 %v1276
        %v1687 = vpop.f32.mrb[0].mxu0
        %v1688 = vadd.f32 %v1290, %v1687
        %v1689 = vpop.f32.mrb[0].mxu0
        %v1690 = vadd.f32 %v1294, %v1689
        %1691 = vmatprep.mubr.f32.mxu0 0.0
        %1692 = vmatmul.mubr.f32.gmra.mrb[0].mxu0 %v1277
        %v1693 = vpop.f32.mrb[0].mxu0
        %v1694 = vadd.f32 %v1290, %v1693
        %v1695 = vpop.f32.mrb[0].mxu0
        %v1696 = vadd.f32 %v1294, %v1695
        %1697 = vmatprep.mubr.f32.mxu0 0.0
        %1698 = vmatmul.mubr.f32.gmra.mrb[0].mxu0 %v1278
        %v1699 = vpop.f32.mrb[0].mxu0
        %v1700 = vadd.f32 %v1290, %v1699
        %v1701 = vpop.f32.mrb[0].mxu0
        %v1702 = vadd.f32 %v1294, %v1701
        %1703 = vmatprep.mubr.f32.mxu0 0.0
        %1704 = vmatmul.mubr.f32.gmra.mrb[0].mxu0 %v1279
        %v1705 = vpop.f32.mrb[0].mxu0
        %v1706 = vadd.f32 %v1290, %v1705
        %v1707 = vpop.f32.mrb[0].mxu0
        %v1708 = vadd.f32 %v1294, %v1707
        %1709 = vmatprep.mubr.f32.mxu0 0.0
        %1710 = vmatmul.mubr.f32.gmra.mrb[0].mxu0 %v1280
        %v1711 = vpop.f32.mrb[0].mxu0
        %v1712 = vadd.f32 %v1290, %v1711
        %v1713 = vpop.f32.mrb[0].mxu0
        %v1714 = vadd.f32 %v1294, %v1713
        %1715 = vmatprep.mubr.f32.mxu0 0.0
        %1716 = vmatmul.mubr.f32.gmra.mrb[0].mxu0 %v1281
        %v1717 = vpop.f32.mrb[0].mxu0
        %v1718 = vadd.f32 %v1290, %v1717
        %v1719 = vpop.f32.mrb[0].mxu0
        %v1720 = vadd.f32 %v1294, %v1719
        %1721 = vmatprep.mubr.f32.mxu0 0.0
        %1722 = vmatmul.mubr.f32.gmra.mrb[0].mxu0 %v1282
        %v1723 = vpop.f32.mrb[0].mxu0
        %v1724 = vadd.f32 %v1290, %v1723
        %v1725 = vpop.f32.mrb[0].mxu0
        %v1726 = vadd.f32 %v1294, %v1725
        %1727 = vmatprep.mubr.f32.mxu0 0.0
        %1728 = vmatmul.mubr.f32.gmra.mrb[0].mxu0 %v1283
        %v1729 = vpop.f32.mrb[0].mxu0
        %v1730 = vadd.f32 %v1290, %v1729
        %v1731 = vpop.f32.mrb[0].mxu0
        %v1732 = vadd.f32 %v1294, %v1731
        %1733 = vmatprep.mubr.f32.mxu0 0.0
        %1734 = vmatmul.mubr.f32.gmra.mrb[0].mxu0 %v1284
        %v1735 = vpop.f32.mrb[0].mxu0
        %v1736 = vadd.f32 %v1290, %v1735
        %v1737 = vpop.f32.mrb[0].mxu0
        %v1738 = vadd.f32 %v1294, %v1737
        %1739 = vmatprep.mubr.f32.mxu0 0.0
        %1740 = vmatmul.mubr.f32.gmra.mrb[0].mxu0 %v1285
        %v1741 = vpop.f32.mrb[0].mxu0
        %v1742 = vadd.f32 %v1290, %v1741
        %v1743 = vpop.f32.mrb[0].mxu0
        %v1744 = vadd.f32 %v1294, %v1743
        %1745 = vdwg.mxu0
        %v1746 = vmul.f32 %v1366, 1.442695
        %v1747 = vpow.pop %v1746
        %v1748 = vmul.f32 %v1372, 1.442695
        %v1749 = vpow.pop %v1748
        %v1750 = vmul.f32 %v1378, 1.442695
        %v1751 = vpow.pop %v1750
        %v1752 = vmul.f32 %v1384, 1.442695
        %v1753 = vpow.pop %v1752
        %v1754 = vmul.f32 %v1390, 1.442695
        %v1755 = vpow.pop %v1754
        %v1756 = vmul.f32 %v1396, 1.442695
        %v1757 = vpow.pop %v1756
        %v1758 = vmul.f32 %v1402, 1.442695
        %v1759 = vpow.pop %v1758
        %v1760 = vmul.f32 %v1408, 1.442695
        %v1761 = vpow.pop %v1760
        %v1762 = vmul.f32 %v1414, 1.442695
        %v1763 = vpow.pop %v1762
        %v1764 = vmul.f32 %v1420, 1.442695
        %v1765 = vpow.pop %v1764
        %v1766 = vmul.f32 %v1426, 1.442695
        %v1767 = vpow.pop %v1766
        %v1768 = vmul.f32 %v1432, 1.442695
        %v1769 = vpow.pop %v1768
        %v1770 = vmul.f32 %v1438, 1.442695
        %v1771 = vpow.pop %v1770
        %v1772 = vmul.f32 %v1444, 1.442695
        %v1773 = vpow.pop %v1772
        %v1774 = vmul.f32 %v1450, 1.442695
        %v1775 = vpow.pop %v1774
        %v1776 = vmul.f32 %v1456, 1.442695
        %v1777 = vpow.pop %v1776
        %v1778 = vmul.f32 %v1462, 1.442695
        %v1779 = vpow.pop %v1778
        %v1780 = vmul.f32 %v1468, 1.442695
        %v1781 = vpow.pop %v1780
        %v1782 = vmul.f32 %v1474, 1.442695
        %v1783 = vpow.pop %v1782
        %v1784 = vmul.f32 %v1480, 1.442695
        %v1785 = vpow.pop %v1784
        %v1786 = vmul.f32 %v1486, 1.442695
        %v1787 = vpow.pop %v1786
        %v1788 = vmul.f32 %v1492, 1.442695
        %v1789 = vpow.pop %v1788
        %v1790 = vmul.f32 %v1498, 1.442695
        %v1791 = vpow.pop %v1790
        %v1792 = vmul.f32 %v1504, 1.442695
        %v1793 = vpow.pop %v1792
        %v1794 = vmul.f32 %v1510, 1.442695
        %v1795 = vpow.pop %v1794
        %v1796 = vmul.f32 %v1516, 1.442695
        %v1797 = vpow.pop %v1796
        %v1798 = vmul.f32 %v1522, 1.442695
        %v1799 = vpow.pop %v1798
        %v1800 = vmul.f32 %v1528, 1.442695
        %v1801 = vpow.pop %v1800
        %v1802 = vmul.f32 %v1534, 1.442695
        %v1803 = vpow.pop %v1802
        %v1804 = vmul.f32 %v1540, 1.442695
        %v1805 = vpow.pop %v1804
        %v1806 = vmul.f32 %v1546, 1.442695
        %v1807 = vpow.pop %v1806
        %v1808 = vmul.f32 %v1552, 1.442695
        %v1809 = vpow.pop %v1808
        %v1810 = vmul.f32 %v1558, 1.442695
        %v1811 = vpow.pop %v1810
        %v1812 = vmul.f32 %v1564, 1.442695
        %v1813 = vpow.pop %v1812
        %v1814 = vmul.f32 %v1570, 1.442695
        %v1815 = vpow.pop %v1814
        %v1816 = vmul.f32 %v1576, 1.442695
        %v1817 = vpow.pop %v1816
        %v1818 = vmul.f32 %v1582, 1.442695
        %v1819 = vpow.pop %v1818
        %v1820 = vmul.f32 %v1588, 1.442695
        %v1821 = vpow.pop %v1820
        %v1822 = vmul.f32 %v1594, 1.442695
        %v1823 = vpow.pop %v1822
        %v1824 = vmul.f32 %v1600, 1.442695
        %v1825 = vpow.pop %v1824
        %v1826 = vmul.f32 %v1606, 1.442695
        %v1827 = vpow.pop %v1826
        %v1828 = vmul.f32 %v1612, 1.442695
        %v1829 = vpow.pop %v1828
        %v1830 = vmul.f32 %v1618, 1.442695
        %v1831 = vpow.pop %v1830
        %v1832 = vmul.f32 %v1624, 1.442695
        %v1833 = vpow.pop %v1832
        %v1834 = vmul.f32 %v1630, 1.442695
        %v1835 = vpow.pop %v1834
        %v1836 = vmul.f32 %v1636, 1.442695
        %v1837 = vpow.pop %v1836
        %v1838 = vmul.f32 %v1642, 1.442695
        %v1839 = vpow.pop %v1838
        %v1840 = vmul.f32 %v1648, 1.442695
        %v1841 = vpow.pop %v1840
        %v1842 = vmul.f32 %v1654, 1.442695
        %v1843 = vpow.pop %v1842
        %v1844 = vmul.f32 %v1660, 1.442695
        %v1845 = vpow.pop %v1844
        %v1846 = vmul.f32 %v1666, 1.442695
        %v1847 = vpow.pop %v1846
        %v1848 = vmul.f32 %v1672, 1.442695
        %v1849 = vpow.pop %v1848
        %v1850 = vmul.f32 %v1678, 1.442695
        %v1851 = vpow.pop %v1850
        %v1852 = vmul.f32 %v1684, 1.442695
        %v1853 = vpow.pop %v1852
        %v1854 = vmul.f32 %v1690, 1.442695
        %v1855 = vpow.pop %v1854
        %v1856 = vmul.f32 %v1696, 1.442695
        %v1857 = vpow.pop %v1856
        %v1858 = vmul.f32 %v1702, 1.442695
        %v1859 = vpow.pop %v1858
        %v1860 = vmul.f32 %v1708, 1.442695
        %v1861 = vpow.pop %v1860
        %v1862 = vmul.f32 %v1714, 1.442695
        %v1863 = vpow.pop %v1862
        %v1864 = vmul.f32 %v1720, 1.442695
        %v1865 = vpow.pop %v1864
        %v1866 = vmul.f32 %v1726, 1.442695
        %v1867 = vpow.pop %v1866
        %v1868 = vmul.f32 %v1732, 1.442695
        %v1869 = vpow.pop %v1868
        %v1870 = vmul.f32 %v1738, 1.442695
        %v1871 = vpow.pop %v1870
        %v1872 = vmul.f32 %v1744, 1.442695
        %v1873 = vpow.pop %v1872
        %v1874 = vmul.f32 %v245, %v1747
        %v1875 = vmul.f32 %v246, %v1749
        %v1876 = vmul.f32 %v247, %v1751
        %v1877 = vmul.f32 %v248, %v1753
        %v1878 = vmul.f32 %v249, %v1755
        %v1879 = vmul.f32 %v250, %v1757
        %v1880 = vmul.f32 %v251, %v1759
        %v1881 = vmul.f32 %v252, %v1761
        %v1882 = vmul.f32 %v253, %v1763
        %v1883 = vmul.f32 %v254, %v1765
        %v1884 = vmul.f32 %v255, %v1767
        %v1885 = vmul.f32 %v256, %v1769
        %v1886 = vmul.f32 %v257, %v1771
        %v1887 = vmul.f32 %v258, %v1773
        %v1888 = vmul.f32 %v259, %v1775
        %v1889 = vmul.f32 %v260, %v1777
        %v1890 = vmul.f32 %v261, %v1779
        %v1891 = vmul.f32 %v262, %v1781
        %v1892 = vmul.f32 %v263, %v1783
        %v1893 = vmul.f32 %v264, %v1785
        %v1894 = vmul.f32 %v265, %v1787
        %v1895 = vmul.f32 %v266, %v1789
        %v1896 = vmul.f32 %v267, %v1791
        %v1897 = vmul.f32 %v268, %v1793
        %v1898 = vmul.f32 %v269, %v1795
        %v1899 = vmul.f32 %v270, %v1797
        %v1900 = vmul.f32 %v271, %v1799
        %v1901 = vmul.f32 %v272, %v1801
        %v1902 = vmul.f32 %v273, %v1803
        %v1903 = vmul.f32 %v274, %v1805
        %v1904 = vmul.f32 %v275, %v1807
        %v1905 = vmul.f32 %v276, %v1809
        %v1906 = vmul.f32 %v277, %v1811
        %v1907 = vmul.f32 %v278, %v1813
        %v1908 = vmul.f32 %v279, %v1815
        %v1909 = vmul.f32 %v280, %v1817
        %v1910 = vmul.f32 %v281, %v1819
        %v1911 = vmul.f32 %v282, %v1821
        %v1912 = vmul.f32 %v283, %v1823
        %v1913 = vmul.f32 %v284, %v1825
        %v1914 = vmul.f32 %v285, %v1827
        %v1915 = vmul.f32 %v286, %v1829
        %v1916 = vmul.f32 %v287, %v1831
        %v1917 = vmul.f32 %v288, %v1833
        %v1918 = vmul.f32 %v289, %v1835
        %v1919 = vmul.f32 %v290, %v1837
        %v1920 = vmul.f32 %v291, %v1839
        %v1921 = vmul.f32 %v292, %v1841
        %v1922 = vmul.f32 %v293, %v1843
        %v1923 = vmul.f32 %v294, %v1845
        %v1924 = vmul.f32 %v295, %v1847
        %v1925 = vmul.f32 %v296, %v1849
        %v1926 = vmul.f32 %v297, %v1851
        %v1927 = vmul.f32 %v298, %v1853
        %v1928 = vmul.f32 %v299, %v1855
        %v1929 = vmul.f32 %v300, %v1857
        %v1930 = vmul.f32 %v301, %v1859
        %v1931 = vmul.f32 %v302, %v1861
        %v1932 = vmul.f32 %v303, %v1863
        %v1933 = vmul.f32 %v304, %v1865
        %v1934 = vmul.f32 %v305, %v1867
        %v1935 = vmul.f32 %v306, %v1869
        %v1936 = vmul.f32 %v307, %v1871
        %v1937 = vmul.f32 %v308, %v1873
        %v1938 = vadd.f32 %v1874, %v1364
        %v1939 = vadd.f32 %v1875, %v1370
        %v1940 = vadd.f32 %v1876, %v1376
        %v1941 = vadd.f32 %v1877, %v1382
        %v1942 = vadd.f32 %v1878, %v1388
        %v1943 = vadd.f32 %v1879, %v1394
        %v1944 = vadd.f32 %v1880, %v1400
        %v1945 = vadd.f32 %v1881, %v1406
        %v1946 = vadd.f32 %v1882, %v1412
        %v1947 = vadd.f32 %v1883, %v1418
        %v1948 = vadd.f32 %v1884, %v1424
        %v1949 = vadd.f32 %v1885, %v1430
        %v1950 = vadd.f32 %v1886, %v1436
        %v1951 = vadd.f32 %v1887, %v1442
        %v1952 = vadd.f32 %v1888, %v1448
        %v1953 = vadd.f32 %v1889, %v1454
        %v1954 = vadd.f32 %v1890, %v1460
        %v1955 = vadd.f32 %v1891, %v1466
        %v1956 = vadd.f32 %v1892, %v1472
        %v1957 = vadd.f32 %v1893, %v1478
        %v1958 = vadd.f32 %v1894, %v1484
        %v1959 = vadd.f32 %v1895, %v1490
        %v1960 = vadd.f32 %v1896, %v1496
        %v1961 = vadd.f32 %v1897, %v1502
        %v1962 = vadd.f32 %v1898, %v1508
        %v1963 = vadd.f32 %v1899, %v1514
        %v1964 = vadd.f32 %v1900, %v1520
        %v1965 = vadd.f32 %v1901, %v1526
        %v1966 = vadd.f32 %v1902, %v1532
        %v1967 = vadd.f32 %v1903, %v1538
        %v1968 = vadd.f32 %v1904, %v1544
        %v1969 = vadd.f32 %v1905, %v1550
        %v1970 = vadd.f32 %v1906, %v1556
        %v1971 = vadd.f32 %v1907, %v1562
        %v1972 = vadd.f32 %v1908, %v1568
        %v1973 = vadd.f32 %v1909, %v1574
        %v1974 = vadd.f32 %v1910, %v1580
        %v1975 = vadd.f32 %v1911, %v1586
        %v1976 = vadd.f32 %v1912, %v1592
        %v1977 = vadd.f32 %v1913, %v1598
        %v1978 = vadd.f32 %v1914, %v1604
        %v1979 = vadd.f32 %v1915, %v1610
        %v1980 = vadd.f32 %v1916, %v1616
        %v1981 = vadd.f32 %v1917, %v1622
        %v1982 = vadd.f32 %v1918, %v1628
        %v1983 = vadd.f32 %v1919, %v1634
        %v1984 = vadd.f32 %v1920, %v1640
        %v1985 = vadd.f32 %v1921, %v1646
        %v1986 = vadd.f32 %v1922, %v1652
        %v1987 = vadd.f32 %v1923, %v1658
        %v1988 = vadd.f32 %v1924, %v1664
        %v1989 = vadd.f32 %v1925, %v1670
        %v1990 = vadd.f32 %v1926, %v1676
        %v1991 = vadd.f32 %v1927, %v1682
        %v1992 = vadd.f32 %v1928, %v1688
        %v1993 = vadd.f32 %v1929, %v1694
        %v1994 = vadd.f32 %v1930, %v1700
        %v1995 = vadd.f32 %v1931, %v1706
        %v1996 = vadd.f32 %v1932, %v1712
        %v1997 = vadd.f32 %v1933, %v1718
        %v1998 = vadd.f32 %v1934, %v1724
        %v1999 = vadd.f32 %v1935, %v1730
        %v2000 = vadd.f32 %v1936, %v1736
        %v2001 = vadd.f32 %v1937, %v1742
        %2002 = vst [vmem:[%s234] sm:$0xff] %v1938
        %2003 = vst [vmem:[%s234 + $0x8] sm:$0xff] %v1939
        %2004 = vst [vmem:[%s234 + $0x10] sm:$0xff] %v1940
        %2005 = vst [vmem:[%s234 + $0x18] sm:$0xff] %v1941
        %2006 = vst [vmem:[%s234 + $0x20] sm:$0xff] %v1942
        %2007 = vst [vmem:[%s234 + $0x28] sm:$0xff] %v1943
        %2008 = vst [vmem:[%s234 + $0x30] sm:$0xff] %v1944
        %2009 = vst [vmem:[%s234 + $0x38] sm:$0xff] %v1945
        %2010 = vst [vmem:[%s234 + $0x40] sm:$0xff] %v1946
        %2011 = vst [vmem:[%s234 + $0x48] sm:$0xff] %v1947
        %2012 = vst [vmem:[%s234 + $0x50] sm:$0xff] %v1948
        %2013 = vst [vmem:[%s234 + $0x58] sm:$0xff] %v1949
        %2014 = vst [vmem:[%s234 + $0x60] sm:$0xff] %v1950
        %2015 = vst [vmem:[%s234 + $0x68] sm:$0xff] %v1951
        %2016 = vst [vmem:[%s234 + $0x70] sm:$0xff] %v1952
        %2017 = vst [vmem:[%s234 + $0x78] sm:$0xff] %v1953
        %2018 = vst [vmem:[%s234 + $0x80] sm:$0xff] %v1954
        %2019 = vst [vmem:[%s234 + $0x88] sm:$0xff] %v1955
        %2020 = vst [vmem:[%s234 + $0x90] sm:$0xff] %v1956
        %2021 = vst [vmem:[%s234 + $0x98] sm:$0xff] %v1957
        %2022 = vst [vmem:[%s234 + $0xa0] sm:$0xff] %v1958
        %2023 = vst [vmem:[%s234 + $0xa8] sm:$0xff] %v1959
        %2024 = vst [vmem:[%s234 + $0xb0] sm:$0xff] %v1960
        %2025 = vst [vmem:[%s234 + $0xb8] sm:$0xff] %v1961
        %2026 = vst [vmem:[%s234 + $0xc0] sm:$0xff] %v1962
        %2027 = vst [vmem:[%s234 + $0xc8] sm:$0xff] %v1963
        %2028 = vst [vmem:[%s234 + $0xd0] sm:$0xff] %v1964
        %2029 = vst [vmem:[%s234 + $0xd8] sm:$0xff] %v1965
        %2030 = vst [vmem:[%s234 + $0xe0] sm:$0xff] %v1966
        %2031 = vst [vmem:[%s234 + $0xe8] sm:$0xff] %v1967
        %2032 = vst [vmem:[%s234 + $0xf0] sm:$0xff] %v1968
        %2033 = vst [vmem:[%s234 + $0xf8] sm:$0xff] %v1969
        %2034 = vst [vmem:[%s234 + $0x100] sm:$0xff] %v1970
        %2035 = vst [vmem:[%s234 + $0x108] sm:$0xff] %v1971
        %2036 = vst [vmem:[%s234 + $0x110] sm:$0xff] %v1972
        %2037 = vst [vmem:[%s234 + $0x118] sm:$0xff] %v1973
        %2038 = vst [vmem:[%s234 + $0x120] sm:$0xff] %v1974
        %2039 = vst [vmem:[%s234 + $0x128] sm:$0xff] %v1975
        %2040 = vst [vmem:[%s234 + $0x130] sm:$0xff] %v1976
        %2041 = vst [vmem:[%s234 + $0x138] sm:$0xff] %v1977
        %2042 = vst [vmem:[%s234 + $0x140] sm:$0xff] %v1978
        %2043 = vst [vmem:[%s234 + $0x148] sm:$0xff] %v1979
        %2044 = vst [vmem:[%s234 + $0x150] sm:$0xff] %v1980
        %2045 = vst [vmem:[%s234 + $0x158] sm:$0xff] %v1981
        %2046 = vst [vmem:[%s234 + $0x160] sm:$0xff] %v1982
        %2047 = vst [vmem:[%s234 + $0x168] sm:$0xff] %v1983
        %2048 = vst [vmem:[%s234 + $0x170] sm:$0xff] %v1984
        %2049 = vst [vmem:[%s234 + $0x178] sm:$0xff] %v1985
        %2050 = vst [vmem:[%s234 + $0x180] sm:$0xff] %v1986
        %2051 = vst [vmem:[%s234 + $0x188] sm:$0xff] %v1987
        %2052 = vst [vmem:[%s234 + $0x190] sm:$0xff] %v1988
        %2053 = vst [vmem:[%s234 + $0x198] sm:$0xff] %v1989
        %2054 = vst [vmem:[%s234 + $0x1a0] sm:$0xff] %v1990
        %2055 = vst [vmem:[%s234 + $0x1a8] sm:$0xff] %v1991
        %2056 = vst [vmem:[%s234 + $0x1b0] sm:$0xff] %v1992
        %2057 = vst [vmem:[%s234 + $0x1b8] sm:$0xff] %v1993
        %2058 = vst [vmem:[%s234 + $0x1c0] sm:$0xff] %v1994
        %2059 = vst [vmem:[%s234 + $0x1c8] sm:$0xff] %v1995
        %2060 = vst [vmem:[%s234 + $0x1d0] sm:$0xff] %v1996
        %2061 = vst [vmem:[%s234 + $0x1d8] sm:$0xff] %v1997
        %2062 = vst [vmem:[%s234 + $0x1e0] sm:$0xff] %v1998
        %2063 = vst [vmem:[%s234 + $0x1e8] sm:$0xff] %v1999
        %2064 = vst [vmem:[%s234 + $0x1f0] sm:$0xff] %v2000
        %2065 = vst [vmem:[%s234 + $0x1f8] sm:$0xff] %v2001
        %2066 = vst [vmem:[%s241] sm:$0xff] %v1366
        %2067 = vst [vmem:[%s241 + $0x8] sm:$0xff] %v1372
        %2068 = vst [vmem:[%s241 + $0x10] sm:$0xff] %v1378
        %2069 = vst [vmem:[%s241 + $0x18] sm:$0xff] %v1384
        %2070 = vst [vmem:[%s241 + $0x20] sm:$0xff] %v1390
        %2071 = vst [vmem:[%s241 + $0x28] sm:$0xff] %v1396
        %2072 = vst [vmem:[%s241 + $0x30] sm:$0xff] %v1402
        %2073 = vst [vmem:[%s241 + $0x38] sm:$0xff] %v1408
        %2074 = vst [vmem:[%s241 + $0x40] sm:$0xff] %v1414
        %2075 = vst [vmem:[%s241 + $0x48] sm:$0xff] %v1420
        %2076 = vst [vmem:[%s241 + $0x50] sm:$0xff] %v1426
        %2077 = vst [vmem:[%s241 + $0x58] sm:$0xff] %v1432
        %2078 = vst [vmem:[%s241 + $0x60] sm:$0xff] %v1438
        %2079 = vst [vmem:[%s241 + $0x68] sm:$0xff] %v1444
        %2080 = vst [vmem:[%s241 + $0x70] sm:$0xff] %v1450
        %2081 = vst [vmem:[%s241 + $0x78] sm:$0xff] %v1456
        %2082 = vst [vmem:[%s241 + $0x80] sm:$0xff] %v1462
        %2083 = vst [vmem:[%s241 + $0x88] sm:$0xff] %v1468
        %2084 = vst [vmem:[%s241 + $0x90] sm:$0xff] %v1474
        %2085 = vst [vmem:[%s241 + $0x98] sm:$0xff] %v1480
        %2086 = vst [vmem:[%s241 + $0xa0] sm:$0xff] %v1486
        %2087 = vst [vmem:[%s241 + $0xa8] sm:$0xff] %v1492
        %2088 = vst [vmem:[%s241 + $0xb0] sm:$0xff] %v1498
        %2089 = vst [vmem:[%s241 + $0xb8] sm:$0xff] %v1504
        %2090 = vst [vmem:[%s241 + $0xc0] sm:$0xff] %v1510
        %2091 = vst [vmem:[%s241 + $0xc8] sm:$0xff] %v1516
        %2092 = vst [vmem:[%s241 + $0xd0] sm:$0xff] %v1522
        %2093 = vst [vmem:[%s241 + $0xd8] sm:$0xff] %v1528
        %2094 = vst [vmem:[%s241 + $0xe0] sm:$0xff] %v1534
        %2095 = vst [vmem:[%s241 + $0xe8] sm:$0xff] %v1540
        %2096 = vst [vmem:[%s241 + $0xf0] sm:$0xff] %v1546
        %2097 = vst [vmem:[%s241 + $0xf8] sm:$0xff] %v1552
        %2098 = vst [vmem:[%s241 + $0x100] sm:$0xff] %v1558
        %2099 = vst [vmem:[%s241 + $0x108] sm:$0xff] %v1564
        %2100 = vst [vmem:[%s241 + $0x110] sm:$0xff] %v1570
        %2101 = vst [vmem:[%s241 + $0x118] sm:$0xff] %v1576
        %2102 = vst [vmem:[%s241 + $0x120] sm:$0xff] %v1582
        %2103 = vst [vmem:[%s241 + $0x128] sm:$0xff] %v1588
        %2104 = vst [vmem:[%s241 + $0x130] sm:$0xff] %v1594
        %2105 = vst [vmem:[%s241 + $0x138] sm:$0xff] %v1600
        %2106 = vst [vmem:[%s241 + $0x140] sm:$0xff] %v1606
        %2107 = vst [vmem:[%s241 + $0x148] sm:$0xff] %v1612
        %2108 = vst [vmem:[%s241 + $0x150] sm:$0xff] %v1618
        %2109 = vst [vmem:[%s241 + $0x158] sm:$0xff] %v1624
        %2110 = vst [vmem:[%s241 + $0x160] sm:$0xff] %v1630
        %2111 = vst [vmem:[%s241 + $0x168] sm:$0xff] %v1636
        %2112 = vst [vmem:[%s241 + $0x170] sm:$0xff] %v1642
        %2113 = vst [vmem:[%s241 + $0x178] sm:$0xff] %v1648
        %2114 = vst [vmem:[%s241 + $0x180] sm:$0xff] %v1654
        %2115 = vst [vmem:[%s241 + $0x188] sm:$0xff] %v1660
        %2116 = vst [vmem:[%s241 + $0x190] sm:$0xff] %v1666
        %2117 = vst [vmem:[%s241 + $0x198] sm:$0xff] %v1672
        %2118 = vst [vmem:[%s241 + $0x1a0] sm:$0xff] %v1678
        %2119 = vst [vmem:[%s241 + $0x1a8] sm:$0xff] %v1684
        %2120 = vst [vmem:[%s241 + $0x1b0] sm:$0xff] %v1690
        %2121 = vst [vmem:[%s241 + $0x1b8] sm:$0xff] %v1696
        %2122 = vst [vmem:[%s241 + $0x1c0] sm:$0xff] %v1702
        %2123 = vst [vmem:[%s241 + $0x1c8] sm:$0xff] %v1708
        %2124 = vst [vmem:[%s241 + $0x1d0] sm:$0xff] %v1714
        %2125 = vst [vmem:[%s241 + $0x1d8] sm:$0xff] %v1720
        %2126 = vst [vmem:[%s241 + $0x1e0] sm:$0xff] %v1726
        %2127 = vst [vmem:[%s241 + $0x1e8] sm:$0xff] %v1732
        %2128 = vst [vmem:[%s241 + $0x1f0] sm:$0xff] %v1738
        %2129 = vst [vmem:[%s241 + $0x1f8] sm:$0xff] %v1744
        %s2130 = sand.u32 %s102, 1
        %s2131 = scalar_lea.sflag [#allocation4], %s2130
        %s2132 = sand.u32 %s102, 1
        %s2133 = smul.addr %s2132, 512
        %s2134 = scalar_lea.vmem [#allocation7], %s2133
        %s2135 = sand.u32 %s128, 1
        %s2136 = scalar_lea.sflag [#allocation9], %s2135
        %s2137 = sand.u32 %s128, 1
        %s2138 = smul.addr %s2137, 512
        %s2139 = scalar_lea.vmem [#allocation8], %s2138
        // Predicated region
        $region41: #{tpu_custom_call.1} parent=31 // pred_check
          %p2140 = pneg %p112
        $region42: #{tpu_custom_call.1} parent=31 // pred_check_branch
          %2142 = sbr.rel (%p2140) target = $region44
        $region43: #{tpu_custom_call.1} parent=31 // pred_region
          %s2143 = smul.u32 64, %s26
          %s2145 = ssub.s32 8192, 8192
          %2146 = vsyncadd %s2131, %s2145
          %s2147 = smul.addr %s2143, 128
          %s2148 = scalar_lea.hbm %s3, %s2147
          %s2149 = sshll.u32 %s2134, 4
          %s2150 = int_to_ptr.vmem [resolvable:$true] %s2149
          %2155 = dma.vmem_to_hbm [thread:$0]  %s2150, 8192, %s2148, %s2131, 128, 128, 8
        $region44: #{tpu_custom_call.1} parent=31 // pred_fallthru
          _
        // Predicated region
        $region45: #{tpu_custom_call.1} parent=31 // pred_check
          %p2156 = pneg %p138
        $region46: #{tpu_custom_call.1} parent=31 // pred_check_branch
          %2158 = sbr.rel (%p2156) target = $region48
        $region47: #{tpu_custom_call.1} parent=31 // pred_region
          %s2159 = smul.u32 64, %s26
          %s2161 = ssub.s32 8192, 8192
          %2162 = vsyncadd %s2136, %s2161
          %s2163 = smul.addr %s2159, 128
          %s2164 = scalar_lea.hbm %s4, %s2163
          %s2165 = sshll.u32 %s2139, 4
          %s2166 = int_to_ptr.vmem [resolvable:$true] %s2165
          %2171 = dma.vmem_to_hbm [thread:$0]  %s2166, 8192, %s2164, %s2136, 128, 128, 8
        $region48: #{tpu_custom_call.1} parent=31 // pred_fallthru
          _
      $region32: #{tpu_custom_call.1} parent=5 // pred_fallthru
        _
      %p2172 = scmp.le.s32.totalorder 2, %s21
      // Predicated region
      $region49: #{tpu_custom_call.1} parent=5 // pred_check
        %p2173 = pneg %p2172
      $region50: #{tpu_custom_call.1} parent=5 // pred_check_branch
        %2175 = sbr.rel (%p2173) target = $region52
      $region51: #{tpu_custom_call.1} parent=5 // pred_region
        %s2176 = ssub.s32 %s21, 2
        // Predicated region
        $region53: #{tpu_custom_call.1} parent=51 // pred_check
          %p2177 = pneg %p118
        $region54: #{tpu_custom_call.1} parent=51 // pred_check_branch
          %2179 = sbr.rel (%p2177) target = $region56
        $region55: #{tpu_custom_call.1} parent=51 // pred_region
          %s2180 = sand.u32 %s103, 1
          %s2181 = scalar_lea.sflag [#allocation4], %s2180
          %s2182 = sand.u32 %s103, 1
          %s2183 = smul.addr %s2182, 512
          %s2184 = scalar_lea.vmem [#allocation7], %s2183
          %2185 = dma.done %s2181, 8192
        $region56: #{tpu_custom_call.1} parent=51 // pred_fallthru
          _
        // Predicated region
        $region57: #{tpu_custom_call.1} parent=51 // pred_check
          %p2186 = pneg %p144
        $region58: #{tpu_custom_call.1} parent=51 // pred_check_branch
          %2188 = sbr.rel (%p2186) target = $region60
        $region59: #{tpu_custom_call.1} parent=51 // pred_region
          %s2189 = sand.u32 %s129, 1
          %s2190 = scalar_lea.sflag [#allocation9], %s2189
          %s2191 = sand.u32 %s129, 1
          %s2192 = smul.addr %s2191, 512
          %s2193 = scalar_lea.vmem [#allocation8], %s2192
          %2194 = dma.done %s2190, 8192
        $region60: #{tpu_custom_call.1} parent=51 // pred_fallthru
          _
      $region52: #{tpu_custom_call.1} parent=5 // pred_fallthru
        _
    $region6: #{tpu_custom_call.1} parent=1 // loop_footer
      %s25 = sadd.s32 1, %s21
    $region7: #{tpu_custom_call.1} parent=1 // loop_footer_branch
      %20 = sbr.rel target = $region3
    $region8: #{tpu_custom_call.1} parent=1 // loop_exit
      _
    %2195 = vsyncpa [#allocation3], 1
    %s2196 = scalar_lea.sflag [#allocation3], 1
    %2197 = vsyncpa %s2196, 1
    %2198 = vsyncpa [#allocation6], 1
    %2199 = vsyncpa [#allocation4], 1
    %s2200 = scalar_lea.sflag [#allocation4], 1
    %2201 = vsyncpa %s2200, 1
    %2202 = vsyncpa [#allocation9], 1
    %s2203 = scalar_lea.sflag [#allocation9], 1
    %2204 = vsyncpa %s2203, 1

</llo_original>
